<compile_context>
chip_gen: v6e
topology: v6e:2x2x1
jax: 0.10.0
libtpu: 0.0.40
codegen_flags: <defaults>
</compile_context>

<pallas_src>
import math
import functools

import jax
import jax.numpy as jnp
from jax.experimental import pallas as pl
from jax.experimental.pallas import tpu as pltpu

NEG_SLOPE = 0.2
LANE = 128


def _round_up(v, m):
    return (v + m - 1) // m * m


def _conv_bias_lrelu_kernel(ph_ref, w_ref, b_ref, o_ref):
    """One (batch, output-row-block) step of the strided 3x3 conv.

    ph_ref: (th+1, 4, Wo+1, Cin_p) bf16 phase-split rows of this block (1-row halo).
            phase p = (kh%2)*2 + (kw%2); local phase-row r maps to padded input row
            2*(row0 + r) + kh%2, phase-col w maps to padded col 2*w + kw%2.
    w_ref : (9, Cin_p, Cout_p)     bf16 scaled weights, tap k = kh*3 + kw.
    b_ref : (1, Cout_p)            f32 bias.
    o_ref : (th, Wo, Cout_p)       output row block (x.dtype).
    """
    th, wo, cout = o_ref.shape
    cin = ph_ref.shape[-1]

    acc = None
    for kh in range(3):
        pr, dr = kh % 2, kh // 2
        for kw in range(3):
            pw, dw = kw % 2, kw // 2
            # tap(kh,kw)[r, w, c] = x_pad[2*(row0+r)+kh, 2*w+kw, c] -- contiguous slices.
            tap = ph_ref[pl.ds(dr, th), 2 * pr + pw, pl.ds(dw, wo), :]  # (th, Wo, Cin_p)
            d = jnp.dot(tap.reshape(th * wo, cin), w_ref[kh * 3 + kw],
                        preferred_element_type=jnp.float32)
            acc = d if acc is None else acc + d          # first dot seeds the accumulator

    acc = acc + b_ref[...].astype(jnp.float32)
    acc = jnp.where(acc >= 0.0, acc, NEG_SLOPE * acc)    # LeakyReLU(0.2) in f32
    o_ref[...] = acc.reshape(th, wo, cout).astype(o_ref.dtype)


def _const_spec(shape, index_map):
    """BlockSpec for a constant-index input; single-buffered when supported."""
    try:
        return pl.BlockSpec(shape, index_map, pipeline_mode=pl.Buffered(1))
    except (TypeError, AttributeError):   # older jax without pipeline_mode / Buffered
        return pl.BlockSpec(shape, index_map)


def downsample_forward(x, weight, bias, *, weight_scale=True):
    """StyleGAN Downsample forward.  x: (N,C,H,W) f32, weight: (Cout,Cin,3,3), bias: (Cout,)."""
    N, C, H, W = x.shape
    Cout, Cin, KH, KW = weight.shape
    assert Cin == C and (KH, KW) == (3, 3)
    stride, pad = 2, 1
    Ho = (H + 2 * pad - KH) // stride + 1
    Wo = (W + 2 * pad - KW) // stride + 1
    scale = math.sqrt(2.0 / (Cin * KH * KW)) if weight_scale else 1.0

    # Lane-dense channel padding (no-op for production StyleGAN channel counts >= 128).
    Cin_p = _round_up(Cin, LANE)
    Cout_p = _round_up(Cout, LANE)

    # Channel-scaled matmul-row target: amortize per-grid-step overhead on low-channel
    # layers (M ~ 2048 at C=128), keep ~512 rows at C>=512 where the step is MXU-bound.
    c_eff = max(Cin_p, Cout_p)
    target_m = int(min(2048, max(512, (2048 * 128) // c_eff)))
    th = max(1, min(Ho, target_m // max(1, Wo)))
    nb = pl.cdiv(Ho, th)
    Hb = th * nb                              # row-padded output height (ragged-safe)

    # ---- glue: NCHW -> NHWC (bf16), pad, stride-2 phase split, row-block with halo ----
    Hp = 2 * (Hb + 1)
    Wp = 2 * (Wo + 1)
    x_nhwc = jnp.transpose(x.astype(jnp.bfloat16), (0, 2, 3, 1))
    x_pad = jnp.pad(x_nhwc, ((0, 0), (1, Hp - 1 - H), (1, Wp - 1 - W), (0, Cin_p - Cin)))
    # ph[n, r, p, w, c] = x_pad[n, 2r + p//2, 2w + p%2, c]
    ph = (x_pad.reshape(N, Hb + 1, 2, Wo + 1, 2, Cin_p)
          .transpose(0, 1, 2, 4, 3, 5)
          .reshape(N, Hb + 1, 4, Wo + 1, Cin_p))
    # Row blocks of th (+1 halo) phase rows -> per-step VMEM is O(th), not O(H).
    main = ph[:, :Hb].reshape(N, nb, th, 4, Wo + 1, Cin_p)
    halo = ph[:, th::th][:, :, None]                       # (N, nb, 1, 4, Wo+1, Cin_p)
    blocks = jnp.concatenate([main, halo], axis=2)         # (N, nb, th+1, 4, Wo+1, Cin_p)

    # weight (Cout,Cin,3,3) -> (3,3,Cin,Cout)*scale -> pad -> (9, Cin_p, Cout_p) bf16
    w_mat = jnp.transpose(weight, (2, 3, 1, 0)) * scale
    w_mat = jnp.pad(w_mat, ((0, 0), (0, 0), (0, Cin_p - Cin), (0, Cout_p - Cout)))
    w_mat = w_mat.reshape(9, Cin_p, Cout_p).astype(jnp.bfloat16)
    b_mat = jnp.pad(bias, (0, Cout_p - Cout)).reshape(1, Cout_p).astype(jnp.float32)

    # ---- VMEM budget (per generation) + cost hint -----------------------------------
    itemsize = jnp.dtype(x.dtype).itemsize
    ph_block = (th + 1) * 4 * (Wo + 1) * Cin_p * 2
    w_bytes = 9 * Cin_p * Cout_p * 2
    out_block = th * Wo * Cout_p * itemsize
    acc_bytes = th * Wo * Cout_p * 4
    tap_bytes = th * Wo * Cin_p * 2
    need = (2 * ph_block                        # double-buffered activation block
            + w_bytes + Cout_p * 4              # single-buffered constants
            + 2 * out_block
            + 2 * acc_bytes + 2 * tap_bytes)    # f32 accumulator + live tap tiles

    try:
        phys_vmem = int(pltpu.get_tpu_info().vmem_capacity_bytes)
    except Exception:
        phys_vmem = 64 * 1024 * 1024            # conservative default: v7x physical VMEM
    cap = phys_vmem - 8 * 1024 * 1024           # headroom for compiler internal scratch
    vmem_limit = None
    if need > 16 * 1024 * 1024:                 # smallest default scoped limit (v5e)
        vmem_limit = max(min(need + (8 << 20), cap), need)   # never cap below `need`

    cost = pl.CostEstimate(
        flops=2 * N * Hb * Wo * 9 * Cin_p * Cout_p,
        transcendentals=0,
        bytes_accessed=int(N * nb * ph_block + w_bytes + Cout_p * 4
                           + N * Hb * Wo * Cout_p * itemsize),
    )

    out = pl.pallas_call(
        _conv_bias_lrelu_kernel,
        out_shape=jax.ShapeDtypeStruct((N, Hb, Wo, Cout_p), x.dtype),
        grid_spec=pltpu.PrefetchScalarGridSpec(
            num_scalar_prefetch=0,
            grid=(N, nb),
            in_specs=[
                # Row-blocked phase input: one small block per (batch, row-block) step.
                pl.BlockSpec((None, None, th + 1, 4, Wo + 1, Cin_p),
                             lambda n, i: (n, i, 0, 0, 0, 0)),
                _const_spec((9, Cin_p, Cout_p), lambda n, i: (0, 0, 0)),
                _const_spec((1, Cout_p), lambda n, i: (0, 0)),
            ],
            out_specs=pl.BlockSpec((None, th, Wo, Cout_p), lambda n, i: (n, i, 0, 0)),
        ),
        compiler_params=pltpu.CompilerParams(
            # Both axes carry no state (disjoint output blocks, no cross-step accumulator)
            # -> safe to shard both across v7x's two TensorCores.
            dimension_semantics=("parallel", "parallel"),
            vmem_limit_bytes=vmem_limit,
        ),
        cost_estimate=cost,
    )(blocks, w_mat, b_mat)

    # ---- glue: drop row/channel padding, back to NCHW --------------------------------
    return jnp.transpose(out[:, :Ho, :, :Cout], (0, 3, 1, 2))


def _reference(x, weight, bias, weight_scale=True):
    Cout, Cin, KH, KW = weight.shape
    scale = math.sqrt(2.0 / (Cin * KH * KW)) if weight_scale else 1.0
    # Match the kernel's bf16 operand cast (both accumulate in f32 on the MXU).
    x_bf = x.astype(jnp.bfloat16)
    w_bf = (weight * scale).astype(jnp.bfloat16)
    y = jax.lax.conv_general_dilated(
        x_bf, w_bf, window_strides=(2, 2), padding=((1, 1), (1, 1)),
        dimension_numbers=("NCHW", "OIHW", "NCHW"),
        preferred_element_type=jnp.float32,
    ) + bias.reshape(1, -1, 1, 1).astype(jnp.float32)
    return jnp.where(y >= 0.0, y, NEG_SLOPE * y)


if __name__ == "__main__":
    key = jax.random.PRNGKey(0)
    kx, kw, kb = jax.random.split(key, 3)

    N, C, H, W = 2, 4, 16, 16
    x = jax.random.normal(kx, (N, C, H, W), dtype=jnp.float32)
    weight = jax.random.normal(kw, (C, C, 3, 3), dtype=jnp.float32)
    bias = 0.1 * jax.random.normal(kb, (C,), dtype=jnp.float32)

    fwd = jax.jit(functools.partial(downsample_forward, weight_scale=True))
    out = jax.block_until_ready(fwd(x, weight, bias))

    ref = _reference(x, weight, bias, weight_scale=True)
    assert out.shape == (N, C, H // 2, W // 2), out.shape
    max_err = float(jnp.max(jnp.abs(out - ref)))
    assert jnp.allclose(out, ref, atol=2e-3, rtol=2e-3), (
        f"mismatch vs lax.conv reference (max abs err {max_err})")
    print("KERNEL_OK")
</pallas_src>

<mosaic_0001>
module attributes {stable_mosaic.version = 11 : i64} {
  func.func @_conv_bias_lrelu_kernel(%arg0: i32, %arg1: i32, %arg2: memref<1x1x9x4x9x128xbf16, #tpu.memory_space<vmem>>, %arg3: memref<9x128x128xbf16, #tpu.memory_space<vmem>>, %arg4: memref<1x128xf32, #tpu.memory_space<vmem>>, %arg5: memref<1x8x8x128xf32, #tpu.memory_space<vmem>>) attributes {dimension_semantics = [#tpu.dimension_semantics<parallel>, #tpu.dimension_semantics<parallel>], iteration_bounds = array<i64: 2, 1>, scalar_prefetch = 0 : i64, scratch_operands = 0 : i64, tpu.core_type = #tpu.core_type<tc>, window_params = [{transform_indices = @transform_0, window_bounds = array<i64: 1, 1, 9, 4, 9, 128>}, {pipeline_mode = #tpu.pipeline_mode<synchronous>, transform_indices = @transform_1, window_bounds = array<i64: 9, 128, 128>}, {pipeline_mode = #tpu.pipeline_mode<synchronous>, transform_indices = @transform_2, window_bounds = array<i64: 1, 128>}, {transform_indices = @transform_3, window_bounds = array<i64: 1, 8, 8, 128>}]} {
    %c0 = arith.constant 0 : index
    %c0_0 = arith.constant 0 : index
    %c0_1 = arith.constant 0 : index
    %c0_2 = arith.constant 0 : index
    %c0_3 = arith.constant 0 : index
    %c0_4 = arith.constant 0 : index
    %0 = vector.load %arg2[%c0, %c0_0, %c0_1, %c0_2, %c0_3, %c0_4] : memref<1x1x9x4x9x128xbf16, #tpu.memory_space<vmem>>, vector<1x1x8x1x8x128xbf16>
    %1 = vector.shape_cast %0 : vector<1x1x8x1x8x128xbf16> to vector<8x8x128xbf16>
    %2 = vector.shape_cast %1 : vector<8x8x128xbf16> to vector<64x128xbf16>
    %c0_5 = arith.constant 0 : index
    %c0_6 = arith.constant 0 : index
    %c0_7 = arith.constant 0 : index
    %3 = vector.load %arg3[%c0_5, %c0_6, %c0_7] : memref<9x128x128xbf16, #tpu.memory_space<vmem>>, vector<1x128x128xbf16>
    %4 = vector.shape_cast %3 : vector<1x128x128xbf16> to vector<128x128xbf16>
    %cst = arith.constant dense<0.000000e+00> : vector<64x128xf32>
    %5 = tpu.matmul %2, %4, %cst {dimension_numbers = #tpu.dot_dimension_numbers<[1], [0], [0], [1], [0, 0, 1, 1], [], []>} : vector<64x128xbf16>, vector<128x128xbf16>, vector<64x128xf32> -> vector<64x128xf32>
    %c0_8 = arith.constant 0 : index
    %c0_9 = arith.constant 0 : index
    %c0_10 = arith.constant 0 : index
    %c1 = arith.constant 1 : index
    %c0_11 = arith.constant 0 : index
    %c0_12 = arith.constant 0 : index
    %6 = vector.load %arg2[%c0_8, %c0_9, %c0_10, %c1, %c0_11, %c0_12] : memref<1x1x9x4x9x128xbf16, #tpu.memory_space<vmem>>, vector<1x1x8x1x8x128xbf16>
    %7 = vector.shape_cast %6 : vector<1x1x8x1x8x128xbf16> to vector<8x8x128xbf16>
    %8 = vector.shape_cast %7 : vector<8x8x128xbf16> to vector<64x128xbf16>
    %c1_13 = arith.constant 1 : index
    %c0_14 = arith.constant 0 : index
    %c0_15 = arith.constant 0 : index
    %9 = vector.load %arg3[%c1_13, %c0_14, %c0_15] : memref<9x128x128xbf16, #tpu.memory_space<vmem>>, vector<1x128x128xbf16>
    %10 = vector.shape_cast %9 : vector<1x128x128xbf16> to vector<128x128xbf16>
    %cst_16 = arith.constant dense<0.000000e+00> : vector<64x128xf32>
    %11 = tpu.matmul %8, %10, %cst_16 {dimension_numbers = #tpu.dot_dimension_numbers<[1], [0], [0], [1], [0, 0, 1, 1], [], []>} : vector<64x128xbf16>, vector<128x128xbf16>, vector<64x128xf32> -> vector<64x128xf32>
    %12 = arith.addf %5, %11 : vector<64x128xf32>
    %c0_17 = arith.constant 0 : index
    %c0_18 = arith.constant 0 : index
    %c0_19 = arith.constant 0 : index
    %c0_20 = arith.constant 0 : index
    %c1_21 = arith.constant 1 : index
    %c0_22 = arith.constant 0 : index
    %13 = vector.load %arg2[%c0_17, %c0_18, %c0_19, %c0_20, %c1_21, %c0_22] : memref<1x1x9x4x9x128xbf16, #tpu.memory_space<vmem>>, vector<1x1x8x1x8x128xbf16>
    %14 = vector.shape_cast %13 : vector<1x1x8x1x8x128xbf16> to vector<8x8x128xbf16>
    %15 = vector.shape_cast %14 : vector<8x8x128xbf16> to vector<64x128xbf16>
    %c2 = arith.constant 2 : index
    %c0_23 = arith.constant 0 : index
    %c0_24 = arith.constant 0 : index
    %16 = vector.load %arg3[%c2, %c0_23, %c0_24] : memref<9x128x128xbf16, #tpu.memory_space<vmem>>, vector<1x128x128xbf16>
    %17 = vector.shape_cast %16 : vector<1x128x128xbf16> to vector<128x128xbf16>
    %cst_25 = arith.constant dense<0.000000e+00> : vector<64x128xf32>
    %18 = tpu.matmul %15, %17, %cst_25 {dimension_numbers = #tpu.dot_dimension_numbers<[1], [0], [0], [1], [0, 0, 1, 1], [], []>} : vector<64x128xbf16>, vector<128x128xbf16>, vector<64x128xf32> -> vector<64x128xf32>
    %19 = arith.addf %12, %18 : vector<64x128xf32>
    %c0_26 = arith.constant 0 : index
    %c0_27 = arith.constant 0 : index
    %c0_28 = arith.constant 0 : index
    %c2_29 = arith.constant 2 : index
    %c0_30 = arith.constant 0 : index
    %c0_31 = arith.constant 0 : index
    %20 = vector.load %arg2[%c0_26, %c0_27, %c0_28, %c2_29, %c0_30, %c0_31] : memref<1x1x9x4x9x128xbf16, #tpu.memory_space<vmem>>, vector<1x1x8x1x8x128xbf16>
    %21 = vector.shape_cast %20 : vector<1x1x8x1x8x128xbf16> to vector<8x8x128xbf16>
    %22 = vector.shape_cast %21 : vector<8x8x128xbf16> to vector<64x128xbf16>
    %c3 = arith.constant 3 : index
    %c0_32 = arith.constant 0 : index
    %c0_33 = arith.constant 0 : index
    %23 = vector.load %arg3[%c3, %c0_32, %c0_33] : memref<9x128x128xbf16, #tpu.memory_space<vmem>>, vector<1x128x128xbf16>
    %24 = vector.shape_cast %23 : vector<1x128x128xbf16> to vector<128x128xbf16>
    %cst_34 = arith.constant dense<0.000000e+00> : vector<64x128xf32>
    %25 = tpu.matmul %22, %24, %cst_34 {dimension_numbers = #tpu.dot_dimension_numbers<[1], [0], [0], [1], [0, 0, 1, 1], [], []>} : vector<64x128xbf16>, vector<128x128xbf16>, vector<64x128xf32> -> vector<64x128xf32>
    %26 = arith.addf %19, %25 : vector<64x128xf32>
    %c0_35 = arith.constant 0 : index
    %c0_36 = arith.constant 0 : index
    %c0_37 = arith.constant 0 : index
    %c3_38 = arith.constant 3 : index
    %c0_39 = arith.constant 0 : index
    %c0_40 = arith.constant 0 : index
    %27 = vector.load %arg2[%c0_35, %c0_36, %c0_37, %c3_38, %c0_39, %c0_40] : memref<1x1x9x4x9x128xbf16, #tpu.memory_space<vmem>>, vector<1x1x8x1x8x128xbf16>
    %28 = vector.shape_cast %27 : vector<1x1x8x1x8x128xbf16> to vector<8x8x128xbf16>
    %29 = vector.shape_cast %28 : vector<8x8x128xbf16> to vector<64x128xbf16>
    %c4 = arith.constant 4 : index
    %c0_41 = arith.constant 0 : index
    %c0_42 = arith.constant 0 : index
    %30 = vector.load %arg3[%c4, %c0_41, %c0_42] : memref<9x128x128xbf16, #tpu.memory_space<vmem>>, vector<1x128x128xbf16>
    %31 = vector.shape_cast %30 : vector<1x128x128xbf16> to vector<128x128xbf16>
    %cst_43 = arith.constant dense<0.000000e+00> : vector<64x128xf32>
    %32 = tpu.matmul %29, %31, %cst_43 {dimension_numbers = #tpu.dot_dimension_numbers<[1], [0], [0], [1], [0, 0, 1, 1], [], []>} : vector<64x128xbf16>, vector<128x128xbf16>, vector<64x128xf32> -> vector<64x128xf32>
    %33 = arith.addf %26, %32 : vector<64x128xf32>
    %c0_44 = arith.constant 0 : index
    %c0_45 = arith.constant 0 : index
    %c0_46 = arith.constant 0 : index
    %c2_47 = arith.constant 2 : index
    %c1_48 = arith.constant 1 : index
    %c0_49 = arith.constant 0 : index
    %34 = vector.load %arg2[%c0_44, %c0_45, %c0_46, %c2_47, %c1_48, %c0_49] : memref<1x1x9x4x9x128xbf16, #tpu.memory_space<vmem>>, vector<1x1x8x1x8x128xbf16>
    %35 = vector.shape_cast %34 : vector<1x1x8x1x8x128xbf16> to vector<8x8x128xbf16>
    %36 = vector.shape_cast %35 : vector<8x8x128xbf16> to vector<64x128xbf16>
    %c5 = arith.constant 5 : index
    %c0_50 = arith.constant 0 : index
    %c0_51 = arith.constant 0 : index
    %37 = vector.load %arg3[%c5, %c0_50, %c0_51] : memref<9x128x128xbf16, #tpu.memory_space<vmem>>, vector<1x128x128xbf16>
    %38 = vector.shape_cast %37 : vector<1x128x128xbf16> to vector<128x128xbf16>
    %cst_52 = arith.constant dense<0.000000e+00> : vector<64x128xf32>
    %39 = tpu.matmul %36, %38, %cst_52 {dimension_numbers = #tpu.dot_dimension_numbers<[1], [0], [0], [1], [0, 0, 1, 1], [], []>} : vector<64x128xbf16>, vector<128x128xbf16>, vector<64x128xf32> -> vector<64x128xf32>
    %40 = arith.addf %33, %39 : vector<64x128xf32>
    %c0_53 = arith.constant 0 : index
    %c0_54 = arith.constant 0 : index
    %c1_55 = arith.constant 1 : index
    %c0_56 = arith.constant 0 : index
    %c0_57 = arith.constant 0 : index
    %c0_58 = arith.constant 0 : index
    %41 = vector.load %arg2[%c0_53, %c0_54, %c1_55, %c0_56, %c0_57, %c0_58] : memref<1x1x9x4x9x128xbf16, #tpu.memory_space<vmem>>, vector<1x1x8x1x8x128xbf16>
    %42 = vector.shape_cast %41 : vector<1x1x8x1x8x128xbf16> to vector<8x8x128xbf16>
    %43 = vector.shape_cast %42 : vector<8x8x128xbf16> to vector<64x128xbf16>
    %c6 = arith.constant 6 : index
    %c0_59 = arith.constant 0 : index
    %c0_60 = arith.constant 0 : index
    %44 = vector.load %arg3[%c6, %c0_59, %c0_60] : memref<9x128x128xbf16, #tpu.memory_space<vmem>>, vector<1x128x128xbf16>
    %45 = vector.shape_cast %44 : vector<1x128x128xbf16> to vector<128x128xbf16>
    %cst_61 = arith.constant dense<0.000000e+00> : vector<64x128xf32>
    %46 = tpu.matmul %43, %45, %cst_61 {dimension_numbers = #tpu.dot_dimension_numbers<[1], [0], [0], [1], [0, 0, 1, 1], [], []>} : vector<64x128xbf16>, vector<128x128xbf16>, vector<64x128xf32> -> vector<64x128xf32>
    %47 = arith.addf %40, %46 : vector<64x128xf32>
    %c0_62 = arith.constant 0 : index
    %c0_63 = arith.constant 0 : index
    %c1_64 = arith.constant 1 : index
    %c1_65 = arith.constant 1 : index
    %c0_66 = arith.constant 0 : index
    %c0_67 = arith.constant 0 : index
    %48 = vector.load %arg2[%c0_62, %c0_63, %c1_64, %c1_65, %c0_66, %c0_67] : memref<1x1x9x4x9x128xbf16, #tpu.memory_space<vmem>>, vector<1x1x8x1x8x128xbf16>
    %49 = vector.shape_cast %48 : vector<1x1x8x1x8x128xbf16> to vector<8x8x128xbf16>
    %50 = vector.shape_cast %49 : vector<8x8x128xbf16> to vector<64x128xbf16>
    %c7 = arith.constant 7 : index
    %c0_68 = arith.constant 0 : index
    %c0_69 = arith.constant 0 : index
    %51 = vector.load %arg3[%c7, %c0_68, %c0_69] : memref<9x128x128xbf16, #tpu.memory_space<vmem>>, vector<1x128x128xbf16>
    %52 = vector.shape_cast %51 : vector<1x128x128xbf16> to vector<128x128xbf16>
    %cst_70 = arith.constant dense<0.000000e+00> : vector<64x128xf32>
    %53 = tpu.matmul %50, %52, %cst_70 {dimension_numbers = #tpu.dot_dimension_numbers<[1], [0], [0], [1], [0, 0, 1, 1], [], []>} : vector<64x128xbf16>, vector<128x128xbf16>, vector<64x128xf32> -> vector<64x128xf32>
    %54 = arith.addf %47, %53 : vector<64x128xf32>
    %c0_71 = arith.constant 0 : index
    %c0_72 = arith.constant 0 : index
    %c1_73 = arith.constant 1 : index
    %c0_74 = arith.constant 0 : index
    %c1_75 = arith.constant 1 : index
    %c0_76 = arith.constant 0 : index
    %55 = vector.load %arg2[%c0_71, %c0_72, %c1_73, %c0_74, %c1_75, %c0_76] : memref<1x1x9x4x9x128xbf16, #tpu.memory_space<vmem>>, vector<1x1x8x1x8x128xbf16>
    %56 = vector.shape_cast %55 : vector<1x1x8x1x8x128xbf16> to vector<8x8x128xbf16>
    %57 = vector.shape_cast %56 : vector<8x8x128xbf16> to vector<64x128xbf16>
    %c8 = arith.constant 8 : index
    %c0_77 = arith.constant 0 : index
    %c0_78 = arith.constant 0 : index
    %58 = vector.load %arg3[%c8, %c0_77, %c0_78] : memref<9x128x128xbf16, #tpu.memory_space<vmem>>, vector<1x128x128xbf16>
    %59 = vector.shape_cast %58 : vector<1x128x128xbf16> to vector<128x128xbf16>
    %cst_79 = arith.constant dense<0.000000e+00> : vector<64x128xf32>
    %60 = tpu.matmul %57, %59, %cst_79 {dimension_numbers = #tpu.dot_dimension_numbers<[1], [0], [0], [1], [0, 0, 1, 1], [], []>} : vector<64x128xbf16>, vector<128x128xbf16>, vector<64x128xf32> -> vector<64x128xf32>
    %61 = arith.addf %54, %60 : vector<64x128xf32>
    %c0_80 = arith.constant 0 : index
    %c0_81 = arith.constant 0 : index
    %62 = vector.load %arg4[%c0_80, %c0_81] : memref<1x128xf32, #tpu.memory_space<vmem>>, vector<1x128xf32>
    %63 = vector.broadcast %62 : vector<1x128xf32> to vector<64x128xf32>
    %64 = arith.addf %61, %63 : vector<64x128xf32>
    %cst_82 = arith.constant 0.000000e+00 : f32
    %65 = vector.broadcast %cst_82 : f32 to vector<64x128xf32>
    %66 = arith.cmpf oge, %64, %65 : vector<64x128xf32>
    %cst_83 = arith.constant 2.000000e-01 : f32
    %67 = vector.broadcast %cst_83 : f32 to vector<64x128xf32>
    %68 = arith.mulf %67, %64 : vector<64x128xf32>
    %69 = arith.select %66, %64, %68 : vector<64x128xi1>, vector<64x128xf32>
    %70 = vector.shape_cast %69 : vector<64x128xf32> to vector<8x8x128xf32>
    %c0_84 = arith.constant 0 : index
    %c0_85 = arith.constant 0 : index
    %c0_86 = arith.constant 0 : index
    %c0_87 = arith.constant 0 : index
    %71 = vector.load %arg5[%c0_84, %c0_85, %c0_86, %c0_87] : memref<1x8x8x128xf32, #tpu.memory_space<vmem>>, vector<1x8x8x128xf32>
    %72 = vector.shape_cast %71 : vector<1x8x8x128xf32> to vector<8x8x128xf32>
    %73 = vector.shape_cast %70 : vector<8x8x128xf32> to vector<1x8x8x128xf32>
    tpu.vector_store %arg5[%c0_84, %c0_85, %c0_86, %c0_87], %73 {strides = array<i32>} : memref<1x8x8x128xf32, #tpu.memory_space<vmem>>, vector<1x8x8x128xf32>,
    return
  }
  func.func @transform_0(%arg0: i32, %arg1: i32) -> (i32, i32, i32, i32, i32, i32) {
    %c0_i32 = arith.constant 0 : i32
    %c0_i32_0 = arith.constant 0 : i32
    %c0_i32_1 = arith.constant 0 : i32
    %c0_i32_2 = arith.constant 0 : i32
    %c0_i32_3 = arith.constant 0 : i32
    return %arg0, %arg1, %c0_i32, %c0_i32_0, %c0_i32_1, %c0_i32_2 : i32, i32, i32, i32, i32, i32
  }
  func.func @transform_1(%arg0: i32, %arg1: i32) -> (i32, i32, i32) {
    %c0_i32 = arith.constant 0 : i32
    %c0_i32_0 = arith.constant 0 : i32
    %c0_i32_1 = arith.constant 0 : i32
    %c0_i32_2 = arith.constant 0 : i32
    return %c0_i32, %c0_i32_0, %c0_i32_1 : i32, i32, i32
  }
  func.func @transform_2(%arg0: i32, %arg1: i32) -> (i32, i32) {
    %c0_i32 = arith.constant 0 : i32
    %c0_i32_0 = arith.constant 0 : i32
    %c0_i32_1 = arith.constant 0 : i32
    return %c0_i32, %c0_i32_0 : i32, i32
  }
  func.func @transform_3(%arg0: i32, %arg1: i32) -> (i32, i32, i32, i32) {
    %c0_i32 = arith.constant 0 : i32
    %c0_i32_0 = arith.constant 0 : i32
    %c0_i32_1 = arith.constant 0 : i32
    return %arg0, %arg1, %c0_i32, %c0_i32_0 : i32, i32, i32, i32
  }
}

</mosaic_0001>

<llo_original>
// kernel: downsample_forward.1
$region0: #{downsample_forward.1}
  #allocation0 [shape = 'u32[]', space=smem, size = 0x4, offset = 0x4, fixed_abs, tag = 'smem constant byte address 0x4 - core index']
  #allocation1 [shape = 'u32[144,128]{1,0:T(1,128)}', space=vmem, size = 0x12000, scoped, tag = 'internal scratch']
  %s0 = inlined_call_operand.vmem [shape: bf16[2,1,9,4,9,128], index: 0, kind: input, shape index: {}]
  %s1 = inlined_call_operand.vmem [shape: bf16[9,128,128], index: 1, kind: input, shape index: {}]
  %s2 = inlined_call_operand.vmem [shape: f32[1,128], index: 2, kind: input, shape index: {}]
  %s3 = inlined_call_operand.vmem [shape: f32[2,8,8,128], index: 3, kind: output, shape index: {}]
  %s4 = sld [smem:[#allocation0]]
  $region45: #{downsample_forward.1} parent=0
    _
  %s6 = ssub.s32 1, %s4
  %s7 = scalar_select 0, %s6, %s4
  loop: start=0, step=1, limit=4
  $region2: #{downsample_forward.1} parent=0 // loop_pre_header
    _
  $region3: #{downsample_forward.1} parent=0 // loop_header
    %s9 = sphi 0, %s13
    %p10 = scmp.ge.s32.totalorder %s9, 4
    %s16 = sphi 0, %s28
    %s17 = sphi 0, %s24
    %s18 = sphi 0, %s16
    %s19 = sphi 0, %s17
    %s20 = sphi 0, %s18
    %s21 = sphi 0, %s19
    %s33 = sphi 0, %s35
    %s36 = sphi 0, %s33
    %s37 = sphi 0, %s36
    %s53 = sphi 0, %s37
    %s57 = sphi 0, %s57
    %s59 = sphi 0, %s57
    %s60 = sphi 0, %s59
    %s74 = sphi 0, %s60
    %s78 = sphi 0, %s78
    %s80 = sphi 0, %s78
    %s81 = sphi 0, %s80
    %s95 = sphi 0, %s81
    %s103 = sphi 0, %s105
    %s106 = sphi 0, %s103
    %s107 = sphi 0, %s106
    %s123 = sphi 0, %s107
  $region4: #{downsample_forward.1} parent=0 // loop_header_branch
    %12 = sbr.rel (%p10) target = $region8
  $region5: #{downsample_forward.1} parent=0 // loop_body
    %s14 = ssub.s32 %s9, 1
    %s15 = ssub.s32 %s9, 2
    %s22 = sadd.s32 1, %s17
    %p23 = scmp.ge.s32.totalorder %s22, 1
    %s24 = scalar_select %p23, 0, %s22
    %s25 = sadd.s32 1, %s16
    %s26 = scalar_select %p23, %s25, %s16
    %p27 = scmp.ge.s32.totalorder %s26, 2
    %s28 = scalar_select %p27, 0, %s26
    %s29 = ssub.s32 %s16, %s28
    %s30 = ssub.s32 %s17, %s24
    %s31 = sor.u32 %s29, %s30
    %p32 = scmp.eq.s32.totalorder %s31, 0
    %s34 = sadd.s32 %s33, 1
    %s35 = scalar_select %p32, %s33, %s34
    %p38 = pneg %p32
    %p39 = scmp.eq.s32.totalorder %s9, 1
    %p40 = por %p38, %p39
    %p41 = scmp.ne.s32.totalorder %s33, %s36
    %p42 = scmp.eq.s32.totalorder %s9, 0
    %p43 = por %p41, %p42
    %p44 = scmp.ne.s32.totalorder %s33, %s36
    %p45 = scmp.eq.s32.totalorder %s14, 1
    %p46 = por %p44, %p45
    %p47 = scmp.ne.s32.totalorder %s36, %s37
    %p48 = scmp.eq.s32.totalorder %s14, 0
    %p49 = por %p47, %p48
    %p50 = scmp.ne.s32.totalorder %s36, %s37
    %p51 = scmp.eq.s32.totalorder %s15, 1
    %p52 = por %p50, %p51
    %p54 = scmp.ne.s32.totalorder %s37, %s53
    %p55 = scmp.eq.s32.totalorder %s15, 0
    %p56 = por %p54, %p55
    %s58 = sadd.s32 %s57, 1
    %p61 = scmp.eq.s32.totalorder %s9, 1
    %p62 = scmp.ne.s32.totalorder %s57, %s59
    %p63 = scmp.eq.s32.totalorder %s9, 0
    %p64 = por %p62, %p63
    %p65 = scmp.ne.s32.totalorder %s57, %s59
    %p66 = scmp.eq.s32.totalorder %s14, 1
    %p67 = por %p65, %p66
    %p68 = scmp.ne.s32.totalorder %s59, %s60
    %p69 = scmp.eq.s32.totalorder %s14, 0
    %p70 = por %p68, %p69
    %p71 = scmp.ne.s32.totalorder %s59, %s60
    %p72 = scmp.eq.s32.totalorder %s15, 1
    %p73 = por %p71, %p72
    %p75 = scmp.ne.s32.totalorder %s60, %s74
    %p76 = scmp.eq.s32.totalorder %s15, 0
    %p77 = por %p75, %p76
    %s79 = sadd.s32 %s78, 1
    %p82 = scmp.eq.s32.totalorder %s9, 1
    %p83 = scmp.ne.s32.totalorder %s78, %s80
    %p84 = scmp.eq.s32.totalorder %s9, 0
    %p85 = por %p83, %p84
    %p86 = scmp.ne.s32.totalorder %s78, %s80
    %p87 = scmp.eq.s32.totalorder %s14, 1
    %p88 = por %p86, %p87
    %p89 = scmp.ne.s32.totalorder %s80, %s81
    %p90 = scmp.eq.s32.totalorder %s14, 0
    %p91 = por %p89, %p90
    %p92 = scmp.ne.s32.totalorder %s80, %s81
    %p93 = scmp.eq.s32.totalorder %s15, 1
    %p94 = por %p92, %p93
    %p96 = scmp.ne.s32.totalorder %s81, %s95
    %p97 = scmp.eq.s32.totalorder %s15, 0
    %p98 = por %p96, %p97
    %s99 = ssub.s32 %s16, %s28
    %s100 = ssub.s32 %s17, %s24
    %s101 = sor.u32 %s99, %s100
    %p102 = scmp.eq.s32.totalorder %s101, 0
    %s104 = sadd.s32 %s103, 1
    %s105 = scalar_select %p102, %s103, %s104
    %p108 = pneg %p102
    %p109 = scmp.eq.s32.totalorder %s9, 1
    %p110 = por %p108, %p109
    %p111 = scmp.ne.s32.totalorder %s103, %s106
    %p112 = scmp.eq.s32.totalorder %s9, 0
    %p113 = por %p111, %p112
    %p114 = scmp.ne.s32.totalorder %s103, %s106
    %p115 = scmp.eq.s32.totalorder %s14, 1
    %p116 = por %p114, %p115
    %p117 = scmp.ne.s32.totalorder %s106, %s107
    %p118 = scmp.eq.s32.totalorder %s14, 0
    %p119 = por %p117, %p118
    %p120 = scmp.ne.s32.totalorder %s106, %s107
    %p121 = scmp.eq.s32.totalorder %s15, 1
    %p122 = por %p120, %p121
    %p124 = scmp.ne.s32.totalorder %s107, %s123
    %p125 = scmp.eq.s32.totalorder %s15, 0
    %p126 = por %p124, %p125
    %p127 = scmp.le.s32.totalorder 1, %s9
    %p128 = scmp.lt.s32.totalorder %s9, 3
    %p129 = pnand %p127, %p128
    %p130 = pneg %p129
    // Predicated region
    $region9: #{downsample_forward.1} parent=5 // pred_check
      _
    $region10: #{downsample_forward.1} parent=5 // pred_check_branch
      %132 = sbr.rel (%p129) target = $region12
    $region11: #{downsample_forward.1} parent=5 // pred_region
      %s133 = ssub.s32 %s9, 1
      // Predicated region
      $region13: #{downsample_forward.1} parent=11 // pred_check
        %p134 = pneg %p70
      $region14: #{downsample_forward.1} parent=11 // pred_check_branch
        %136 = sbr.rel (%p134) target = $region16
      $region15: #{downsample_forward.1} parent=11 // pred_region
        _
      $region16: #{downsample_forward.1} parent=11 // pred_fallthru
        _
      // Predicated region
      $region17: #{downsample_forward.1} parent=11 // pred_check
        %p137 = pneg %p91
      $region18: #{downsample_forward.1} parent=11 // pred_check_branch
        %139 = sbr.rel (%p137) target = $region20
      $region19: #{downsample_forward.1} parent=11 // pred_region
        _
      $region20: #{downsample_forward.1} parent=11 // pred_fallthru
        _
    $region12: #{downsample_forward.1} parent=5 // pred_fallthru
      _
    %p140 = scmp.lt.s32.totalorder %s9, 2
    // Predicated region
    $region21: #{downsample_forward.1} parent=5 // pred_check
      %p141 = pneg %p140
    $region22: #{downsample_forward.1} parent=5 // pred_check_branch
      %143 = sbr.rel (%p141) target = $region24
    $region23: #{downsample_forward.1} parent=5 // pred_region
      // Predicated region
      $region25: #{downsample_forward.1} parent=23 // pred_check
        %p144 = pneg %p43
      $region26: #{downsample_forward.1} parent=23 // pred_check_branch
        %146 = sbr.rel (%p144) target = $region28
      $region27: #{downsample_forward.1} parent=23 // pred_region
        %p147 = scmp.lt.s32.totalorder %s16, 1
        %s148 = scalar_select %p147, %s16, 1
        %p149 = scmp.lt.s32.totalorder %s17, 0
        %s150 = scalar_select %p149, %s17, 0
        %s151 = smul.addr %s150, 72
        %s152 = smul.addr %s148, 72
        %s153 = sadd.s32 %s151, %s152
        %s154 = smul.addr %s153, 4
        %s155 = scalar_lea.vmem %s0, %s154
      $region28: #{downsample_forward.1} parent=23 // pred_fallthru
        _
    $region24: #{downsample_forward.1} parent=5 // pred_fallthru
      _
    %p156 = scmp.le.s32.totalorder 1, %s9
    %p157 = scmp.lt.s32.totalorder %s9, 3
    %p158 = pnand %p156, %p157
    %p159 = pneg %p158
    // Predicated region
    $region29: #{downsample_forward.1} parent=5 // pred_check
      _
    $region30: #{downsample_forward.1} parent=5 // pred_check_branch
      %161 = sbr.rel (%p158) target = $region32
    $region31: #{downsample_forward.1} parent=5 // pred_region
      %s162 = ssub.s32 %s9, 1
      %p163 = scmp.lt.s32.totalorder %s18, 1
      %s164 = scalar_select %p163, %s18, 1
      %p165 = scmp.lt.s32.totalorder %s19, 0
      %s166 = scalar_select %p165, %s19, 0
      %s167 = smul.addr %s166, 72
      %s168 = smul.addr %s164, 72
      %s169 = sadd.s32 %s167, %s168
      %s170 = smul.addr %s169, 4
      %s171 = scalar_lea.vmem %s0, %s170
      %p172 = pneg %p49
      %p173 = pneg %p46
      %p174 = pneg %p70
      %p175 = pneg %p67
      %p176 = pneg %p91
      %p177 = pneg %p88
      %p178 = pneg %p119
      %p179 = pneg %p116
      %s180 = smul.u32 8, %s19
      %p181 = scmp.lt.s32.totalorder %s18, 1
      %s182 = scalar_select %p181, %s18, 1
      %p183 = scmp.lt.s32.totalorder %s180, 7
      %s184 = scalar_select %p183, %s180, 7
      %s185 = smul.addr %s182, 8
      %s186 = sadd.s32 %s184, %s185
      %s187 = smul.addr %s186, 8
      %s188 = scalar_lea.vmem %s3, %s187
      %p189 = scmp.lt.s32.totalorder %s18, 1
      %s190 = scalar_select %p189, %s18, 1
      %p191 = scmp.lt.s32.totalorder %s19, 0
      %s192 = scalar_select %p191, %s19, 0
      %s193 = smul.addr %s192, 72
      %s194 = smul.addr %s190, 72
      %s195 = sadd.s32 %s193, %s194
      %s196 = smul.addr %s195, 4
      %s197 = scalar_lea.vmem %s0, %s196
      %s198 = smul.u32 8, %s19
      %p199 = scmp.lt.s32.totalorder %s18, 1
      %s200 = scalar_select %p199, %s18, 1
      %p201 = scmp.lt.s32.totalorder %s198, 7
      %s202 = scalar_select %p201, %s198, 7
      %s203 = smul.addr %s200, 8
      %s204 = sadd.s32 %s202, %s203
      %s205 = smul.addr %s204, 8
      %s206 = scalar_lea.vmem %s3, %s205
      %s207 = smul.u32 8, %s19
      %v209 = vld [vmem:[%s197] sm:$0xf]
      %v210 = vld [vmem:[%s197 + $0x20] sm:$0xf]
      %v211 = vld [vmem:[%s197 + $0x40] sm:$0xf]
      %v212 = vld [vmem:[%s197 + $0x60] sm:$0xf]
      %v213 = vld [vmem:[%s197 + $0x80] sm:$0xf]
      %v214 = vld [vmem:[%s197 + $0xa0] sm:$0xf]
      %v215 = vld [vmem:[%s197 + $0xc0] sm:$0xf]
      %v216 = vld [vmem:[%s197 + $0xe0] sm:$0xf]
      %v217 = vld [vmem:[%s1] sm:$0xf]
      %v218 = vld [vmem:[%s1 + $0x4] sm:$0xf]
      %v219 = vld [vmem:[%s1 + $0x8] sm:$0xf]
      %v220 = vld [vmem:[%s1 + $0xc] sm:$0xf]
      %v221 = vld [vmem:[%s1 + $0x10] sm:$0xf]
      %v222 = vld [vmem:[%s1 + $0x14] sm:$0xf]
      %v223 = vld [vmem:[%s1 + $0x18] sm:$0xf]
      %v224 = vld [vmem:[%s1 + $0x1c] sm:$0xf]
      %v225 = vld [vmem:[%s1 + $0x20] sm:$0xf]
      %v226 = vld [vmem:[%s1 + $0x24] sm:$0xf]
      %v227 = vld [vmem:[%s1 + $0x28] sm:$0xf]
      %v228 = vld [vmem:[%s1 + $0x2c] sm:$0xf]
      %v229 = vld [vmem:[%s1 + $0x30] sm:$0xf]
      %v230 = vld [vmem:[%s1 + $0x34] sm:$0xf]
      %v231 = vld [vmem:[%s1 + $0x38] sm:$0xf]
      %v232 = vld [vmem:[%s1 + $0x3c] sm:$0xf]
      %s233 = scalar_lea.vmem %s197, 8
      %v234 = vld [vmem:[%s233] sm:$0xf]
      %v235 = vld [vmem:[%s233 + $0x20] sm:$0xf]
      %v236 = vld [vmem:[%s233 + $0x40] sm:$0xf]
      %v237 = vld [vmem:[%s233 + $0x60] sm:$0xf]
      %v238 = vld [vmem:[%s233 + $0x80] sm:$0xf]
      %v239 = vld [vmem:[%s233 + $0xa0] sm:$0xf]
      %v240 = vld [vmem:[%s233 + $0xc0] sm:$0xf]
      %v241 = vld [vmem:[%s233 + $0xe0] sm:$0xf]
      %s242 = scalar_lea.vmem %s1, 64
      %v243 = vld [vmem:[%s242] sm:$0xf]
      %v244 = vld [vmem:[%s242 + $0x4] sm:$0xf]
      %v245 = vld [vmem:[%s242 + $0x8] sm:$0xf]
      %v246 = vld [vmem:[%s242 + $0xc] sm:$0xf]
      %v247 = vld [vmem:[%s242 + $0x10] sm:$0xf]
      %v248 = vld [vmem:[%s242 + $0x14] sm:$0xf]
      %v249 = vld [vmem:[%s242 + $0x18] sm:$0xf]
      %v250 = vld [vmem:[%s242 + $0x1c] sm:$0xf]
      %v251 = vld [vmem:[%s242 + $0x20] sm:$0xf]
      %v252 = vld [vmem:[%s242 + $0x24] sm:$0xf]
      %v253 = vld [vmem:[%s242 + $0x28] sm:$0xf]
      %v254 = vld [vmem:[%s242 + $0x2c] sm:$0xf]
      %v255 = vld [vmem:[%s242 + $0x30] sm:$0xf]
      %v256 = vld [vmem:[%s242 + $0x34] sm:$0xf]
      %v257 = vld [vmem:[%s242 + $0x38] sm:$0xf]
      %v258 = vld [vmem:[%s242 + $0x3c] sm:$0xf]
      %v267 = vunpack.c.l.b16 %v234
      %v268 = vunpack.c.l.b16 %v235
      %v269 = vunpack.c.l.b16 %v236
      %v270 = vunpack.c.l.b16 %v237
      %v271 = vunpack.c.l.b16 %v238
      %v272 = vunpack.c.l.b16 %v239
      %v273 = vunpack.c.l.b16 %v240
      %v274 = vunpack.c.l.b16 %v241
      %v275 = vpack.c.b16 %v268, %v267
      %v276 = vpack.c.b16 %v270, %v269
      %v277 = vpack.c.b16 %v272, %v271
      %v278 = vpack.c.b16 %v274, %v273
      %v299 = vunpack.c.l.b16 %v243
      %v300 = vunpack.c.l.b16 %v244
      %v301 = vunpack.c.l.b16 %v245
      %v302 = vunpack.c.l.b16 %v246
      %v303 = vunpack.c.l.b16 %v247
      %v304 = vunpack.c.l.b16 %v248
      %v305 = vunpack.c.l.b16 %v249
      %v306 = vunpack.c.l.b16 %v250
      %v307 = vunpack.c.l.b16 %v251
      %v308 = vunpack.c.l.b16 %v252
      %v309 = vunpack.c.l.b16 %v253
      %v310 = vunpack.c.l.b16 %v254
      %v311 = vunpack.c.l.b16 %v255
      %v312 = vunpack.c.l.b16 %v256
      %v313 = vunpack.c.l.b16 %v257
      %v314 = vunpack.c.l.b16 %v258
      %v315 = vpack.c.b16 %v300, %v299
      %v316 = vpack.c.b16 %v302, %v301
      %v317 = vpack.c.b16 %v304, %v303
      %v318 = vpack.c.b16 %v306, %v305
      %v319 = vpack.c.b16 %v308, %v307
      %v320 = vpack.c.b16 %v310, %v309
      %v321 = vpack.c.b16 %v312, %v311
      %v322 = vpack.c.b16 %v314, %v313
      %331 = vmatprep.subr.bf16.mxu0 0
      %332 = vmatpush1.bf16.msra.mxu0 %v322
      %333 = vmatprep.subr.bf16.mxu0 0
      %334 = vmatpush1.bf16.msra.mxu0 %v321
      %335 = vmatprep.subr.bf16.mxu0 0
      %336 = vmatpush1.bf16.msra.mxu0 %v320
      %337 = vmatprep.subr.bf16.mxu0 0
      %338 = vmatpush1.bf16.msra.mxu0 %v319
      %339 = vmatprep.subr.bf16.mxu0 0
      %340 = vmatpush1.bf16.msra.mxu0 %v318
      %341 = vmatprep.subr.bf16.mxu0 0
      %342 = vmatpush1.bf16.msra.mxu0 %v317
      %343 = vmatprep.subr.bf16.mxu0 0
      %344 = vmatpush1.bf16.msra.mxu0 %v316
      %345 = vmatprep.subr.bf16.mxu0 0
      %346 = vmatpush1.bf16.msra.mxu0 %v315
      %347 = vmatprep.subr.bf16.mxu0 0
      %348 = vmatpush2.bf16.msra.mxu0 0
      %349 = vmatprep.subr.bf16.mxu0 0
      %350 = vmatpush2.bf16.msra.mxu0 0
      %351 = vmatprep.subr.bf16.mxu0 0
      %352 = vmatpush2.bf16.msra.mxu0 0
      %353 = vmatprep.subr.bf16.mxu0 0
      %354 = vmatpush2.bf16.msra.mxu0 0
      %355 = vmatprep.subr.bf16.mxu0 0
      %356 = vmatpush2.bf16.msra.mxu0 0
      %357 = vmatprep.subr.bf16.mxu0 0
      %358 = vmatpush2.bf16.msra.mxu0 0
      %359 = vmatprep.subr.bf16.mxu0 0
      %360 = vmatpush2.bf16.msra.mxu0 0
      %361 = vmatprep.subr.bf16.mxu0 0
      %362 = vmatpush2.bf16.msra.mxu0 0
      %363 = vmatprep.mubr.bf16.mxu0 0
      %364 = vmatmul.mubr.bf16.gmra.mxu0 %v275
      %v365 = vpop.f32.mrf.mxu0
      %v366 = vadd.f32 0.0, %v365
      %v367 = vpop.f32.mrf.mxu0
      %v368 = vpop.f32.mrf.mxu0
      %v369 = vadd.f32 0.0, %v368
      %v370 = vpop.f32.mrf.mxu0
      %371 = vmatprep.mubr.bf16.mxu0 0
      %372 = vmatmul.mubr.bf16.gmra.mxu0 %v276
      %v373 = vpop.f32.mrf.mxu0
      %v374 = vadd.f32 0.0, %v373
      %v375 = vpop.f32.mrf.mxu0
      %v376 = vpop.f32.mrf.mxu0
      %v377 = vadd.f32 0.0, %v376
      %v378 = vpop.f32.mrf.mxu0
      %379 = vmatprep.mubr.bf16.mxu0 0
      %380 = vmatmul.mubr.bf16.gmra.mxu0 %v277
      %v381 = vpop.f32.mrf.mxu0
      %v382 = vadd.f32 0.0, %v381
      %v383 = vpop.f32.mrf.mxu0
      %v384 = vpop.f32.mrf.mxu0
      %v385 = vadd.f32 0.0, %v384
      %v386 = vpop.f32.mrf.mxu0
      %387 = vmatprep.mubr.bf16.mxu0 0
      %388 = vmatmul.mubr.bf16.gmra.mxu0 %v278
      %v389 = vpop.f32.mrf.mxu0
      %v390 = vadd.f32 0.0, %v389
      %v391 = vpop.f32.mrf.mxu0
      %v392 = vpop.f32.mrf.mxu0
      %v393 = vadd.f32 0.0, %v392
      %v394 = vpop.f32.mrf.mxu0
      %395 = vdwg.mxu0
      %v404 = vunpack.c.l.b16 %v209
      %v405 = vunpack.c.l.b16 %v210
      %v406 = vunpack.c.l.b16 %v211
      %v407 = vunpack.c.l.b16 %v212
      %v408 = vunpack.c.l.b16 %v213
      %v409 = vunpack.c.l.b16 %v214
      %v410 = vunpack.c.l.b16 %v215
      %v411 = vunpack.c.l.b16 %v216
      %v412 = vpack.c.b16 %v405, %v404
      %v413 = vpack.c.b16 %v407, %v406
      %v414 = vpack.c.b16 %v409, %v408
      %v415 = vpack.c.b16 %v411, %v410
      %v436 = vunpack.c.l.b16 %v217
      %v437 = vunpack.c.l.b16 %v218
      %v438 = vunpack.c.l.b16 %v219
      %v439 = vunpack.c.l.b16 %v220
      %v440 = vunpack.c.l.b16 %v221
      %v441 = vunpack.c.l.b16 %v222
      %v442 = vunpack.c.l.b16 %v223
      %v443 = vunpack.c.l.b16 %v224
      %v444 = vunpack.c.l.b16 %v225
      %v445 = vunpack.c.l.b16 %v226
      %v446 = vunpack.c.l.b16 %v227
      %v447 = vunpack.c.l.b16 %v228
      %v448 = vunpack.c.l.b16 %v229
      %v449 = vunpack.c.l.b16 %v230
      %v450 = vunpack.c.l.b16 %v231
      %v451 = vunpack.c.l.b16 %v232
      %v452 = vpack.c.b16 %v437, %v436
      %v453 = vpack.c.b16 %v439, %v438
      %v454 = vpack.c.b16 %v441, %v440
      %v455 = vpack.c.b16 %v443, %v442
      %v456 = vpack.c.b16 %v445, %v444
      %v457 = vpack.c.b16 %v447, %v446
      %v458 = vpack.c.b16 %v449, %v448
      %v459 = vpack.c.b16 %v451, %v450
      %468 = vmatprep.subr.bf16.mxu0 0
      %469 = vmatpush1.bf16.msra.mxu0 %v459
      %470 = vmatprep.subr.bf16.mxu0 0
      %471 = vmatpush1.bf16.msra.mxu0 %v458
      %472 = vmatprep.subr.bf16.mxu0 0
      %473 = vmatpush1.bf16.msra.mxu0 %v457
      %474 = vmatprep.subr.bf16.mxu0 0
      %475 = vmatpush1.bf16.msra.mxu0 %v456
      %476 = vmatprep.subr.bf16.mxu0 0
      %477 = vmatpush1.bf16.msra.mxu0 %v455
      %478 = vmatprep.subr.bf16.mxu0 0
      %479 = vmatpush1.bf16.msra.mxu0 %v454
      %480 = vmatprep.subr.bf16.mxu0 0
      %481 = vmatpush1.bf16.msra.mxu0 %v453
      %482 = vmatprep.subr.bf16.mxu0 0
      %483 = vmatpush1.bf16.msra.mxu0 %v452
      %484 = vmatprep.subr.bf16.mxu0 0
      %485 = vmatpush2.bf16.msra.mxu0 0
      %486 = vmatprep.subr.bf16.mxu0 0
      %487 = vmatpush2.bf16.msra.mxu0 0
      %488 = vmatprep.subr.bf16.mxu0 0
      %489 = vmatpush2.bf16.msra.mxu0 0
      %490 = vmatprep.subr.bf16.mxu0 0
      %491 = vmatpush2.bf16.msra.mxu0 0
      %492 = vmatprep.subr.bf16.mxu0 0
      %493 = vmatpush2.bf16.msra.mxu0 0
      %494 = vmatprep.subr.bf16.mxu0 0
      %495 = vmatpush2.bf16.msra.mxu0 0
      %496 = vmatprep.subr.bf16.mxu0 0
      %497 = vmatpush2.bf16.msra.mxu0 0
      %498 = vmatprep.subr.bf16.mxu0 0
      %499 = vmatpush2.bf16.msra.mxu0 0
      %500 = vmatprep.mubr.bf16.mxu0 0
      %501 = vmatmul.mubr.bf16.gmra.mxu0 %v412
      %v502 = vpop.f32.mrf.mxu0
      %v503 = vadd.f32 %v366, %v502
      %v504 = vpop.f32.mrf.mxu0
      %v505 = vpop.f32.mrf.mxu0
      %v506 = vadd.f32 %v369, %v505
      %v507 = vpop.f32.mrf.mxu0
      %508 = vmatprep.mubr.bf16.mxu0 0
      %509 = vmatmul.mubr.bf16.gmra.mxu0 %v413
      %v510 = vpop.f32.mrf.mxu0
      %v511 = vadd.f32 %v374, %v510
      %v512 = vpop.f32.mrf.mxu0
      %v513 = vpop.f32.mrf.mxu0
      %v514 = vadd.f32 %v377, %v513
      %v515 = vpop.f32.mrf.mxu0
      %516 = vmatprep.mubr.bf16.mxu0 0
      %517 = vmatmul.mubr.bf16.gmra.mxu0 %v414
      %v518 = vpop.f32.mrf.mxu0
      %v519 = vadd.f32 %v382, %v518
      %v520 = vpop.f32.mrf.mxu0
      %v521 = vpop.f32.mrf.mxu0
      %v522 = vadd.f32 %v385, %v521
      %v523 = vpop.f32.mrf.mxu0
      %524 = vmatprep.mubr.bf16.mxu0 0
      %525 = vmatmul.mubr.bf16.gmra.mxu0 %v415
      %v526 = vpop.f32.mrf.mxu0
      %v527 = vadd.f32 %v390, %v526
      %v528 = vpop.f32.mrf.mxu0
      %v529 = vpop.f32.mrf.mxu0
      %v530 = vadd.f32 %v393, %v529
      %v531 = vpop.f32.mrf.mxu0
      %532 = vdwg.mxu0
      %v533 = vld [vmem:[%s197] sm:$0xf]
      %v534 = vld [vmem:[%s197 + $0x4] sm:$0x1]
      %v535 = vld [vmem:[%s197 + $0x20] sm:$0xf]
      %v536 = vld [vmem:[%s197 + $0x24] sm:$0x1]
      %v537 = vld [vmem:[%s197 + $0x40] sm:$0xf]
      %v538 = vld [vmem:[%s197 + $0x44] sm:$0x1]
      %v539 = vld [vmem:[%s197 + $0x60] sm:$0xf]
      %v540 = vld [vmem:[%s197 + $0x64] sm:$0x1]
      %v541 = vld [vmem:[%s197 + $0x80] sm:$0xf]
      %v542 = vld [vmem:[%s197 + $0x84] sm:$0x1]
      %v543 = vld [vmem:[%s197 + $0xa0] sm:$0xf]
      %v544 = vld [vmem:[%s197 + $0xa4] sm:$0x1]
      %v545 = vld [vmem:[%s197 + $0xc0] sm:$0xf]
      %v546 = vld [vmem:[%s197 + $0xc4] sm:$0x1]
      %v547 = vld [vmem:[%s197 + $0xe0] sm:$0xf]
      %v548 = vld [vmem:[%s197 + $0xe4] sm:$0x1]
      %vm549 = vsmask.f32 3328
      %vm550 = vsmask.f32 7440
      %vm551 = vmor %vm549, %vm550
      %v553 = vshrl.u32 %v533, 16
      %v555 = vrot.slane %v553, 4
      %v556 = vshll.u32 %v533, 16
      %v558 = vrot.slane %v556, 5
      %v559 = vor.u32 %v555, %v558
      %v560 = vrot.slane %v559, 4
      %v562 = vshll.u32 %v534, 16
      %v564 = vrot.slane %v562, 5
      %v565 = vsel %vm551, %v560, %v564
      %v567 = vshrl.u32 %v535, 16
      %v569 = vrot.slane %v567, 4
      %v570 = vshll.u32 %v535, 16
      %v572 = vrot.slane %v570, 5
      %v573 = vor.u32 %v569, %v572
      %v574 = vrot.slane %v573, 4
      %v576 = vshll.u32 %v536, 16
      %v578 = vrot.slane %v576, 5
      %v579 = vsel %vm551, %v574, %v578
      %v581 = vshrl.u32 %v537, 16
      %v583 = vrot.slane %v581, 4
      %v584 = vshll.u32 %v537, 16
      %v586 = vrot.slane %v584, 5
      %v587 = vor.u32 %v583, %v586
      %v588 = vrot.slane %v587, 4
      %v590 = vshll.u32 %v538, 16
      %v592 = vrot.slane %v590, 5
      %v593 = vsel %vm551, %v588, %v592
      %v595 = vshrl.u32 %v539, 16
      %v597 = vrot.slane %v595, 4
      %v598 = vshll.u32 %v539, 16
      %v600 = vrot.slane %v598, 5
      %v601 = vor.u32 %v597, %v600
      %v602 = vrot.slane %v601, 4
      %v604 = vshll.u32 %v540, 16
      %v606 = vrot.slane %v604, 5
      %v607 = vsel %vm551, %v602, %v606
      %v609 = vshrl.u32 %v541, 16
      %v611 = vrot.slane %v609, 4
      %v612 = vshll.u32 %v541, 16
      %v614 = vrot.slane %v612, 5
      %v615 = vor.u32 %v611, %v614
      %v616 = vrot.slane %v615, 4
      %v618 = vshll.u32 %v542, 16
      %v620 = vrot.slane %v618, 5
      %v621 = vsel %vm551, %v616, %v620
      %v623 = vshrl.u32 %v543, 16
      %v625 = vrot.slane %v623, 4
      %v626 = vshll.u32 %v543, 16
      %v628 = vrot.slane %v626, 5
      %v629 = vor.u32 %v625, %v628
      %v630 = vrot.slane %v629, 4
      %v632 = vshll.u32 %v544, 16
      %v634 = vrot.slane %v632, 5
      %v635 = vsel %vm551, %v630, %v634
      %v637 = vshrl.u32 %v545, 16
      %v639 = vrot.slane %v637, 4
      %v640 = vshll.u32 %v545, 16
      %v642 = vrot.slane %v640, 5
      %v643 = vor.u32 %v639, %v642
      %v644 = vrot.slane %v643, 4
      %v646 = vshll.u32 %v546, 16
      %v648 = vrot.slane %v646, 5
      %v649 = vsel %vm551, %v644, %v648
      %v651 = vshrl.u32 %v547, 16
      %v653 = vrot.slane %v651, 4
      %v654 = vshll.u32 %v547, 16
      %v656 = vrot.slane %v654, 5
      %v657 = vor.u32 %v653, %v656
      %v658 = vrot.slane %v657, 4
      %v660 = vshll.u32 %v548, 16
      %v662 = vrot.slane %v660, 5
      %v663 = vsel %vm551, %v658, %v662
      %s664 = scalar_lea.vmem %s1, 128
      %v665 = vld [vmem:[%s664] sm:$0xf]
      %v666 = vld [vmem:[%s664 + $0x4] sm:$0xf]
      %v667 = vld [vmem:[%s664 + $0x8] sm:$0xf]
      %v668 = vld [vmem:[%s664 + $0xc] sm:$0xf]
      %v669 = vld [vmem:[%s664 + $0x10] sm:$0xf]
      %v670 = vld [vmem:[%s664 + $0x14] sm:$0xf]
      %v671 = vld [vmem:[%s664 + $0x18] sm:$0xf]
      %v672 = vld [vmem:[%s664 + $0x1c] sm:$0xf]
      %v673 = vld [vmem:[%s664 + $0x20] sm:$0xf]
      %v674 = vld [vmem:[%s664 + $0x24] sm:$0xf]
      %v675 = vld [vmem:[%s664 + $0x28] sm:$0xf]
      %v676 = vld [vmem:[%s664 + $0x2c] sm:$0xf]
      %v677 = vld [vmem:[%s664 + $0x30] sm:$0xf]
      %v678 = vld [vmem:[%s664 + $0x34] sm:$0xf]
      %v679 = vld [vmem:[%s664 + $0x38] sm:$0xf]
      %v680 = vld [vmem:[%s664 + $0x3c] sm:$0xf]
      %v681 = vunpack.c.l.b16 %v565
      %v682 = vunpack.c.l.b16 %v579
      %v683 = vunpack.c.l.b16 %v593
      %v684 = vunpack.c.l.b16 %v607
      %v685 = vunpack.c.l.b16 %v621
      %v686 = vunpack.c.l.b16 %v635
      %v687 = vunpack.c.l.b16 %v649
      %v688 = vunpack.c.l.b16 %v663
      %v689 = vpack.c.b16 %v682, %v681
      %v690 = vpack.c.b16 %v684, %v683
      %v691 = vpack.c.b16 %v686, %v685
      %v692 = vpack.c.b16 %v688, %v687
      %v713 = vunpack.c.l.b16 %v665
      %v714 = vunpack.c.l.b16 %v666
      %v715 = vunpack.c.l.b16 %v667
      %v716 = vunpack.c.l.b16 %v668
      %v717 = vunpack.c.l.b16 %v669
      %v718 = vunpack.c.l.b16 %v670
      %v719 = vunpack.c.l.b16 %v671
      %v720 = vunpack.c.l.b16 %v672
      %v721 = vunpack.c.l.b16 %v673
      %v722 = vunpack.c.l.b16 %v674
      %v723 = vunpack.c.l.b16 %v675
      %v724 = vunpack.c.l.b16 %v676
      %v725 = vunpack.c.l.b16 %v677
      %v726 = vunpack.c.l.b16 %v678
      %v727 = vunpack.c.l.b16 %v679
      %v728 = vunpack.c.l.b16 %v680
      %v729 = vpack.c.b16 %v714, %v713
      %v730 = vpack.c.b16 %v716, %v715
      %v731 = vpack.c.b16 %v718, %v717
      %v732 = vpack.c.b16 %v720, %v719
      %v733 = vpack.c.b16 %v722, %v721
      %v734 = vpack.c.b16 %v724, %v723
      %v735 = vpack.c.b16 %v726, %v725
      %v736 = vpack.c.b16 %v728, %v727
      %745 = vmatprep.subr.bf16.mxu0 0
      %746 = vmatpush1.bf16.msra.mxu0 %v736
      %747 = vmatprep.subr.bf16.mxu0 0
      %748 = vmatpush1.bf16.msra.mxu0 %v735
      %749 = vmatprep.subr.bf16.mxu0 0
      %750 = vmatpush1.bf16.msra.mxu0 %v734
      %751 = vmatprep.subr.bf16.mxu0 0
      %752 = vmatpush1.bf16.msra.mxu0 %v733
      %753 = vmatprep.subr.bf16.mxu0 0
      %754 = vmatpush1.bf16.msra.mxu0 %v732
      %755 = vmatprep.subr.bf16.mxu0 0
      %756 = vmatpush1.bf16.msra.mxu0 %v731
      %757 = vmatprep.subr.bf16.mxu0 0
      %758 = vmatpush1.bf16.msra.mxu0 %v730
      %759 = vmatprep.subr.bf16.mxu0 0
      %760 = vmatpush1.bf16.msra.mxu0 %v729
      %761 = vmatprep.subr.bf16.mxu0 0
      %762 = vmatpush2.bf16.msra.mxu0 0
      %763 = vmatprep.subr.bf16.mxu0 0
      %764 = vmatpush2.bf16.msra.mxu0 0
      %765 = vmatprep.subr.bf16.mxu0 0
      %766 = vmatpush2.bf16.msra.mxu0 0
      %767 = vmatprep.subr.bf16.mxu0 0
      %768 = vmatpush2.bf16.msra.mxu0 0
      %769 = vmatprep.subr.bf16.mxu0 0
      %770 = vmatpush2.bf16.msra.mxu0 0
      %771 = vmatprep.subr.bf16.mxu0 0
      %772 = vmatpush2.bf16.msra.mxu0 0
      %773 = vmatprep.subr.bf16.mxu0 0
      %774 = vmatpush2.bf16.msra.mxu0 0
      %775 = vmatprep.subr.bf16.mxu0 0
      %776 = vmatpush2.bf16.msra.mxu0 0
      %777 = vmatprep.mubr.bf16.mxu0 0
      %778 = vmatmul.mubr.bf16.gmra.mxu0 %v689
      %v779 = vpop.f32.mrf.mxu0
      %v780 = vadd.f32 0.0, %v779
      %v781 = vpop.f32.mrf.mxu0
      %v782 = vpop.f32.mrf.mxu0
      %v783 = vadd.f32 0.0, %v782
      %v784 = vpop.f32.mrf.mxu0
      %785 = vmatprep.mubr.bf16.mxu0 0
      %786 = vmatmul.mubr.bf16.gmra.mxu0 %v690
      %v787 = vpop.f32.mrf.mxu0
      %v788 = vadd.f32 0.0, %v787
      %v789 = vpop.f32.mrf.mxu0
      %v790 = vpop.f32.mrf.mxu0
      %v791 = vadd.f32 0.0, %v790
      %v792 = vpop.f32.mrf.mxu0
      %793 = vmatprep.mubr.bf16.mxu0 0
      %794 = vmatmul.mubr.bf16.gmra.mxu0 %v691
      %v795 = vpop.f32.mrf.mxu0
      %v796 = vadd.f32 0.0, %v795
      %v797 = vpop.f32.mrf.mxu0
      %v798 = vpop.f32.mrf.mxu0
      %v799 = vadd.f32 0.0, %v798
      %v800 = vpop.f32.mrf.mxu0
      %801 = vmatprep.mubr.bf16.mxu0 0
      %802 = vmatmul.mubr.bf16.gmra.mxu0 %v692
      %v803 = vpop.f32.mrf.mxu0
      %v804 = vadd.f32 0.0, %v803
      %v805 = vpop.f32.mrf.mxu0
      %v806 = vpop.f32.mrf.mxu0
      %v807 = vadd.f32 0.0, %v806
      %v808 = vpop.f32.mrf.mxu0
      %809 = vdwg.mxu0
      %v810 = vadd.f32 %v503, %v780
      %v811 = vadd.f32 %v506, %v783
      %v812 = vadd.f32 %v511, %v788
      %v813 = vadd.f32 %v514, %v791
      %v814 = vadd.f32 %v519, %v796
      %v815 = vadd.f32 %v522, %v799
      %v816 = vadd.f32 %v527, %v804
      %v817 = vadd.f32 %v530, %v807
      %s818 = scalar_lea.vmem %s197, 16
      %v819 = vld [vmem:[%s818] sm:$0xf]
      %v820 = vld [vmem:[%s818 + $0x20] sm:$0xf]
      %v821 = vld [vmem:[%s818 + $0x40] sm:$0xf]
      %v822 = vld [vmem:[%s818 + $0x60] sm:$0xf]
      %v823 = vld [vmem:[%s818 + $0x80] sm:$0xf]
      %v824 = vld [vmem:[%s818 + $0xa0] sm:$0xf]
      %v825 = vld [vmem:[%s818 + $0xc0] sm:$0xf]
      %v826 = vld [vmem:[%s818 + $0xe0] sm:$0xf]
      %s827 = scalar_lea.vmem %s1, 192
      %v828 = vld [vmem:[%s827] sm:$0xf]
      %v829 = vld [vmem:[%s827 + $0x4] sm:$0xf]
      %v830 = vld [vmem:[%s827 + $0x8] sm:$0xf]
      %v831 = vld [vmem:[%s827 + $0xc] sm:$0xf]
      %v832 = vld [vmem:[%s827 + $0x10] sm:$0xf]
      %v833 = vld [vmem:[%s827 + $0x14] sm:$0xf]
      %v834 = vld [vmem:[%s827 + $0x18] sm:$0xf]
      %v835 = vld [vmem:[%s827 + $0x1c] sm:$0xf]
      %v836 = vld [vmem:[%s827 + $0x20] sm:$0xf]
      %v837 = vld [vmem:[%s827 + $0x24] sm:$0xf]
      %v838 = vld [vmem:[%s827 + $0x28] sm:$0xf]
      %v839 = vld [vmem:[%s827 + $0x2c] sm:$0xf]
      %v840 = vld [vmem:[%s827 + $0x30] sm:$0xf]
      %v841 = vld [vmem:[%s827 + $0x34] sm:$0xf]
      %v842 = vld [vmem:[%s827 + $0x38] sm:$0xf]
      %v843 = vld [vmem:[%s827 + $0x3c] sm:$0xf]
      %v852 = vunpack.c.l.b16 %v819
      %v853 = vunpack.c.l.b16 %v820
      %v854 = vunpack.c.l.b16 %v821
      %v855 = vunpack.c.l.b16 %v822
      %v856 = vunpack.c.l.b16 %v823
      %v857 = vunpack.c.l.b16 %v824
      %v858 = vunpack.c.l.b16 %v825
      %v859 = vunpack.c.l.b16 %v826
      %v860 = vpack.c.b16 %v853, %v852
      %v861 = vpack.c.b16 %v855, %v854
      %v862 = vpack.c.b16 %v857, %v856
      %v863 = vpack.c.b16 %v859, %v858
      %v884 = vunpack.c.l.b16 %v828
      %v885 = vunpack.c.l.b16 %v829
      %v886 = vunpack.c.l.b16 %v830
      %v887 = vunpack.c.l.b16 %v831
      %v888 = vunpack.c.l.b16 %v832
      %v889 = vunpack.c.l.b16 %v833
      %v890 = vunpack.c.l.b16 %v834
      %v891 = vunpack.c.l.b16 %v835
      %v892 = vunpack.c.l.b16 %v836
      %v893 = vunpack.c.l.b16 %v837
      %v894 = vunpack.c.l.b16 %v838
      %v895 = vunpack.c.l.b16 %v839
      %v896 = vunpack.c.l.b16 %v840
      %v897 = vunpack.c.l.b16 %v841
      %v898 = vunpack.c.l.b16 %v842
      %v899 = vunpack.c.l.b16 %v843
      %v900 = vpack.c.b16 %v885, %v884
      %v901 = vpack.c.b16 %v887, %v886
      %v902 = vpack.c.b16 %v889, %v888
      %v903 = vpack.c.b16 %v891, %v890
      %v904 = vpack.c.b16 %v893, %v892
      %v905 = vpack.c.b16 %v895, %v894
      %v906 = vpack.c.b16 %v897, %v896
      %v907 = vpack.c.b16 %v899, %v898
      %916 = vmatprep.subr.bf16.mxu0 0
      %917 = vmatpush1.bf16.msra.mxu0 %v907
      %918 = vmatprep.subr.bf16.mxu0 0
      %919 = vmatpush1.bf16.msra.mxu0 %v906
      %920 = vmatprep.subr.bf16.mxu0 0
      %921 = vmatpush1.bf16.msra.mxu0 %v905
      %922 = vmatprep.subr.bf16.mxu0 0
      %923 = vmatpush1.bf16.msra.mxu0 %v904
      %924 = vmatprep.subr.bf16.mxu0 0
      %925 = vmatpush1.bf16.msra.mxu0 %v903
      %926 = vmatprep.subr.bf16.mxu0 0
      %927 = vmatpush1.bf16.msra.mxu0 %v902
      %928 = vmatprep.subr.bf16.mxu0 0
      %929 = vmatpush1.bf16.msra.mxu0 %v901
      %930 = vmatprep.subr.bf16.mxu0 0
      %931 = vmatpush1.bf16.msra.mxu0 %v900
      %932 = vmatprep.subr.bf16.mxu0 0
      %933 = vmatpush2.bf16.msra.mxu0 0
      %934 = vmatprep.subr.bf16.mxu0 0
      %935 = vmatpush2.bf16.msra.mxu0 0
      %936 = vmatprep.subr.bf16.mxu0 0
      %937 = vmatpush2.bf16.msra.mxu0 0
      %938 = vmatprep.subr.bf16.mxu0 0
      %939 = vmatpush2.bf16.msra.mxu0 0
      %940 = vmatprep.subr.bf16.mxu0 0
      %941 = vmatpush2.bf16.msra.mxu0 0
      %942 = vmatprep.subr.bf16.mxu0 0
      %943 = vmatpush2.bf16.msra.mxu0 0
      %944 = vmatprep.subr.bf16.mxu0 0
      %945 = vmatpush2.bf16.msra.mxu0 0
      %946 = vmatprep.subr.bf16.mxu0 0
      %947 = vmatpush2.bf16.msra.mxu0 0
      %948 = vmatprep.mubr.bf16.mxu0 0
      %949 = vmatmul.mubr.bf16.gmra.mxu0 %v860
      %v950 = vpop.f32.mrf.mxu0
      %v951 = vadd.f32 0.0, %v950
      %v952 = vpop.f32.mrf.mxu0
      %v953 = vpop.f32.mrf.mxu0
      %v954 = vadd.f32 0.0, %v953
      %v955 = vpop.f32.mrf.mxu0
      %956 = vmatprep.mubr.bf16.mxu0 0
      %957 = vmatmul.mubr.bf16.gmra.mxu0 %v861
      %v958 = vpop.f32.mrf.mxu0
      %v959 = vadd.f32 0.0, %v958
      %v960 = vpop.f32.mrf.mxu0
      %v961 = vpop.f32.mrf.mxu0
      %v962 = vadd.f32 0.0, %v961
      %v963 = vpop.f32.mrf.mxu0
      %964 = vmatprep.mubr.bf16.mxu0 0
      %965 = vmatmul.mubr.bf16.gmra.mxu0 %v862
      %v966 = vpop.f32.mrf.mxu0
      %v967 = vadd.f32 0.0, %v966
      %v968 = vpop.f32.mrf.mxu0
      %v969 = vpop.f32.mrf.mxu0
      %v970 = vadd.f32 0.0, %v969
      %v971 = vpop.f32.mrf.mxu0
      %972 = vmatprep.mubr.bf16.mxu0 0
      %973 = vmatmul.mubr.bf16.gmra.mxu0 %v863
      %v974 = vpop.f32.mrf.mxu0
      %v975 = vadd.f32 0.0, %v974
      %v976 = vpop.f32.mrf.mxu0
      %v977 = vpop.f32.mrf.mxu0
      %v978 = vadd.f32 0.0, %v977
      %v979 = vpop.f32.mrf.mxu0
      %980 = vdwg.mxu0
      %v981 = vadd.f32 %v810, %v951
      %v982 = vadd.f32 %v811, %v954
      %v983 = vadd.f32 %v812, %v959
      %v984 = vadd.f32 %v813, %v962
      %v985 = vadd.f32 %v814, %v967
      %v986 = vadd.f32 %v815, %v970
      %v987 = vadd.f32 %v816, %v975
      %v988 = vadd.f32 %v817, %v978
      %s989 = scalar_lea.vmem %s197, 24
      %v990 = vld [vmem:[%s989] sm:$0xf]
      %v991 = vld [vmem:[%s989 + $0x20] sm:$0xf]
      %v992 = vld [vmem:[%s989 + $0x40] sm:$0xf]
      %v993 = vld [vmem:[%s989 + $0x60] sm:$0xf]
      %v994 = vld [vmem:[%s989 + $0x80] sm:$0xf]
      %v995 = vld [vmem:[%s989 + $0xa0] sm:$0xf]
      %v996 = vld [vmem:[%s989 + $0xc0] sm:$0xf]
      %v997 = vld [vmem:[%s989 + $0xe0] sm:$0xf]
      %s998 = scalar_lea.vmem %s1, 256
      %v999 = vld [vmem:[%s998] sm:$0xf]
      %v1000 = vld [vmem:[%s998 + $0x4] sm:$0xf]
      %v1001 = vld [vmem:[%s998 + $0x8] sm:$0xf]
      %v1002 = vld [vmem:[%s998 + $0xc] sm:$0xf]
      %v1003 = vld [vmem:[%s998 + $0x10] sm:$0xf]
      %v1004 = vld [vmem:[%s998 + $0x14] sm:$0xf]
      %v1005 = vld [vmem:[%s998 + $0x18] sm:$0xf]
      %v1006 = vld [vmem:[%s998 + $0x1c] sm:$0xf]
      %v1007 = vld [vmem:[%s998 + $0x20] sm:$0xf]
      %v1008 = vld [vmem:[%s998 + $0x24] sm:$0xf]
      %v1009 = vld [vmem:[%s998 + $0x28] sm:$0xf]
      %v1010 = vld [vmem:[%s998 + $0x2c] sm:$0xf]
      %v1011 = vld [vmem:[%s998 + $0x30] sm:$0xf]
      %v1012 = vld [vmem:[%s998 + $0x34] sm:$0xf]
      %v1013 = vld [vmem:[%s998 + $0x38] sm:$0xf]
      %v1014 = vld [vmem:[%s998 + $0x3c] sm:$0xf]
      %v1023 = vunpack.c.l.b16 %v990
      %v1024 = vunpack.c.l.b16 %v991
      %v1025 = vunpack.c.l.b16 %v992
      %v1026 = vunpack.c.l.b16 %v993
      %v1027 = vunpack.c.l.b16 %v994
      %v1028 = vunpack.c.l.b16 %v995
      %v1029 = vunpack.c.l.b16 %v996
      %v1030 = vunpack.c.l.b16 %v997
      %v1031 = vpack.c.b16 %v1024, %v1023
      %v1032 = vpack.c.b16 %v1026, %v1025
      %v1033 = vpack.c.b16 %v1028, %v1027
      %v1034 = vpack.c.b16 %v1030, %v1029
      %v1055 = vunpack.c.l.b16 %v999
      %v1056 = vunpack.c.l.b16 %v1000
      %v1057 = vunpack.c.l.b16 %v1001
      %v1058 = vunpack.c.l.b16 %v1002
      %v1059 = vunpack.c.l.b16 %v1003
      %v1060 = vunpack.c.l.b16 %v1004
      %v1061 = vunpack.c.l.b16 %v1005
      %v1062 = vunpack.c.l.b16 %v1006
      %v1063 = vunpack.c.l.b16 %v1007
      %v1064 = vunpack.c.l.b16 %v1008
      %v1065 = vunpack.c.l.b16 %v1009
      %v1066 = vunpack.c.l.b16 %v1010
      %v1067 = vunpack.c.l.b16 %v1011
      %v1068 = vunpack.c.l.b16 %v1012
      %v1069 = vunpack.c.l.b16 %v1013
      %v1070 = vunpack.c.l.b16 %v1014
      %v1071 = vpack.c.b16 %v1056, %v1055
      %v1072 = vpack.c.b16 %v1058, %v1057
      %v1073 = vpack.c.b16 %v1060, %v1059
      %v1074 = vpack.c.b16 %v1062, %v1061
      %v1075 = vpack.c.b16 %v1064, %v1063
      %v1076 = vpack.c.b16 %v1066, %v1065
      %v1077 = vpack.c.b16 %v1068, %v1067
      %v1078 = vpack.c.b16 %v1070, %v1069
      %1087 = vmatprep.subr.bf16.mxu0 0
      %1088 = vmatpush1.bf16.msra.mxu0 %v1078
      %1089 = vmatprep.subr.bf16.mxu0 0
      %1090 = vmatpush1.bf16.msra.mxu0 %v1077
      %1091 = vmatprep.subr.bf16.mxu0 0
      %1092 = vmatpush1.bf16.msra.mxu0 %v1076
      %1093 = vmatprep.subr.bf16.mxu0 0
      %1094 = vmatpush1.bf16.msra.mxu0 %v1075
      %1095 = vmatprep.subr.bf16.mxu0 0
      %1096 = vmatpush1.bf16.msra.mxu0 %v1074
      %1097 = vmatprep.subr.bf16.mxu0 0
      %1098 = vmatpush1.bf16.msra.mxu0 %v1073
      %1099 = vmatprep.subr.bf16.mxu0 0
      %1100 = vmatpush1.bf16.msra.mxu0 %v1072
      %1101 = vmatprep.subr.bf16.mxu0 0
      %1102 = vmatpush1.bf16.msra.mxu0 %v1071
      %1103 = vmatprep.subr.bf16.mxu0 0
      %1104 = vmatpush2.bf16.msra.mxu0 0
      %1105 = vmatprep.subr.bf16.mxu0 0
      %1106 = vmatpush2.bf16.msra.mxu0 0
      %1107 = vmatprep.subr.bf16.mxu0 0
      %1108 = vmatpush2.bf16.msra.mxu0 0
      %1109 = vmatprep.subr.bf16.mxu0 0
      %1110 = vmatpush2.bf16.msra.mxu0 0
      %1111 = vmatprep.subr.bf16.mxu0 0
      %1112 = vmatpush2.bf16.msra.mxu0 0
      %1113 = vmatprep.subr.bf16.mxu0 0
      %1114 = vmatpush2.bf16.msra.mxu0 0
      %1115 = vmatprep.subr.bf16.mxu0 0
      %1116 = vmatpush2.bf16.msra.mxu0 0
      %1117 = vmatprep.subr.bf16.mxu0 0
      %1118 = vmatpush2.bf16.msra.mxu0 0
      %1119 = vmatprep.mubr.bf16.mxu0 0
      %1120 = vmatmul.mubr.bf16.gmra.mxu0 %v1031
      %v1121 = vpop.f32.mrf.mxu0
      %v1122 = vadd.f32 0.0, %v1121
      %v1123 = vpop.f32.mrf.mxu0
      %v1124 = vpop.f32.mrf.mxu0
      %v1125 = vadd.f32 0.0, %v1124
      %v1126 = vpop.f32.mrf.mxu0
      %1127 = vmatprep.mubr.bf16.mxu0 0
      %1128 = vmatmul.mubr.bf16.gmra.mxu0 %v1032
      %v1129 = vpop.f32.mrf.mxu0
      %v1130 = vadd.f32 0.0, %v1129
      %v1131 = vpop.f32.mrf.mxu0
      %v1132 = vpop.f32.mrf.mxu0
      %v1133 = vadd.f32 0.0, %v1132
      %v1134 = vpop.f32.mrf.mxu0
      %1135 = vmatprep.mubr.bf16.mxu0 0
      %1136 = vmatmul.mubr.bf16.gmra.mxu0 %v1033
      %v1137 = vpop.f32.mrf.mxu0
      %v1138 = vadd.f32 0.0, %v1137
      %v1139 = vpop.f32.mrf.mxu0
      %v1140 = vpop.f32.mrf.mxu0
      %v1141 = vadd.f32 0.0, %v1140
      %v1142 = vpop.f32.mrf.mxu0
      %1143 = vmatprep.mubr.bf16.mxu0 0
      %1144 = vmatmul.mubr.bf16.gmra.mxu0 %v1034
      %v1145 = vpop.f32.mrf.mxu0
      %v1146 = vadd.f32 0.0, %v1145
      %v1147 = vpop.f32.mrf.mxu0
      %v1148 = vpop.f32.mrf.mxu0
      %v1149 = vadd.f32 0.0, %v1148
      %v1150 = vpop.f32.mrf.mxu0
      %1151 = vdwg.mxu0
      %v1152 = vadd.f32 %v981, %v1122
      %v1153 = vadd.f32 %v982, %v1125
      %v1154 = vadd.f32 %v983, %v1130
      %v1155 = vadd.f32 %v984, %v1133
      %v1156 = vadd.f32 %v985, %v1138
      %v1157 = vadd.f32 %v986, %v1141
      %v1158 = vadd.f32 %v987, %v1146
      %v1159 = vadd.f32 %v988, %v1149
      %v1160 = vld [vmem:[%s818] sm:$0xf]
      %v1161 = vld [vmem:[%s818 + $0x4] sm:$0x1]
      %v1162 = vld [vmem:[%s818 + $0x20] sm:$0xf]
      %v1163 = vld [vmem:[%s818 + $0x24] sm:$0x1]
      %v1164 = vld [vmem:[%s818 + $0x40] sm:$0xf]
      %v1165 = vld [vmem:[%s818 + $0x44] sm:$0x1]
      %v1166 = vld [vmem:[%s818 + $0x60] sm:$0xf]
      %v1167 = vld [vmem:[%s818 + $0x64] sm:$0x1]
      %v1168 = vld [vmem:[%s818 + $0x80] sm:$0xf]
      %v1169 = vld [vmem:[%s818 + $0x84] sm:$0x1]
      %v1170 = vld [vmem:[%s818 + $0xa0] sm:$0xf]
      %v1171 = vld [vmem:[%s818 + $0xa4] sm:$0x1]
      %v1172 = vld [vmem:[%s818 + $0xc0] sm:$0xf]
      %v1173 = vld [vmem:[%s818 + $0xc4] sm:$0x1]
      %v1174 = vld [vmem:[%s818 + $0xe0] sm:$0xf]
      %v1175 = vld [vmem:[%s818 + $0xe4] sm:$0x1]
      %v1177 = vshrl.u32 %v1160, 16
      %v1179 = vrot.slane %v1177, 4
      %v1180 = vshll.u32 %v1160, 16
      %v1182 = vrot.slane %v1180, 5
      %v1183 = vor.u32 %v1179, %v1182
      %v1184 = vrot.slane %v1183, 4
      %v1186 = vshll.u32 %v1161, 16
      %v1188 = vrot.slane %v1186, 5
      %v1189 = vsel %vm551, %v1184, %v1188
      %v1191 = vshrl.u32 %v1162, 16
      %v1193 = vrot.slane %v1191, 4
      %v1194 = vshll.u32 %v1162, 16
      %v1196 = vrot.slane %v1194, 5
      %v1197 = vor.u32 %v1193, %v1196
      %v1198 = vrot.slane %v1197, 4
      %v1200 = vshll.u32 %v1163, 16
      %v1202 = vrot.slane %v1200, 5
      %v1203 = vsel %vm551, %v1198, %v1202
      %v1205 = vshrl.u32 %v1164, 16
      %v1207 = vrot.slane %v1205, 4
      %v1208 = vshll.u32 %v1164, 16
      %v1210 = vrot.slane %v1208, 5
      %v1211 = vor.u32 %v1207, %v1210
      %v1212 = vrot.slane %v1211, 4
      %v1214 = vshll.u32 %v1165, 16
      %v1216 = vrot.slane %v1214, 5
      %v1217 = vsel %vm551, %v1212, %v1216
      %v1219 = vshrl.u32 %v1166, 16
      %v1221 = vrot.slane %v1219, 4
      %v1222 = vshll.u32 %v1166, 16
      %v1224 = vrot.slane %v1222, 5
      %v1225 = vor.u32 %v1221, %v1224
      %v1226 = vrot.slane %v1225, 4
      %v1228 = vshll.u32 %v1167, 16
      %v1230 = vrot.slane %v1228, 5
      %v1231 = vsel %vm551, %v1226, %v1230
      %v1233 = vshrl.u32 %v1168, 16
      %v1235 = vrot.slane %v1233, 4
      %v1236 = vshll.u32 %v1168, 16
      %v1238 = vrot.slane %v1236, 5
      %v1239 = vor.u32 %v1235, %v1238
      %v1240 = vrot.slane %v1239, 4
      %v1242 = vshll.u32 %v1169, 16
      %v1244 = vrot.slane %v1242, 5
      %v1245 = vsel %vm551, %v1240, %v1244
      %v1247 = vshrl.u32 %v1170, 16
      %v1249 = vrot.slane %v1247, 4
      %v1250 = vshll.u32 %v1170, 16
      %v1252 = vrot.slane %v1250, 5
      %v1253 = vor.u32 %v1249, %v1252
      %v1254 = vrot.slane %v1253, 4
      %v1256 = vshll.u32 %v1171, 16
      %v1258 = vrot.slane %v1256, 5
      %v1259 = vsel %vm551, %v1254, %v1258
      %v1261 = vshrl.u32 %v1172, 16
      %v1263 = vrot.slane %v1261, 4
      %v1264 = vshll.u32 %v1172, 16
      %v1266 = vrot.slane %v1264, 5
      %v1267 = vor.u32 %v1263, %v1266
      %v1268 = vrot.slane %v1267, 4
      %v1270 = vshll.u32 %v1173, 16
      %v1272 = vrot.slane %v1270, 5
      %v1273 = vsel %vm551, %v1268, %v1272
      %v1275 = vshrl.u32 %v1174, 16
      %v1277 = vrot.slane %v1275, 4
      %v1278 = vshll.u32 %v1174, 16
      %v1280 = vrot.slane %v1278, 5
      %v1281 = vor.u32 %v1277, %v1280
      %v1282 = vrot.slane %v1281, 4
      %v1284 = vshll.u32 %v1175, 16
      %v1286 = vrot.slane %v1284, 5
      %v1287 = vsel %vm551, %v1282, %v1286
      %s1288 = scalar_lea.vmem %s1, 320
      %v1289 = vld [vmem:[%s1288] sm:$0xf]
      %v1290 = vld [vmem:[%s1288 + $0x4] sm:$0xf]
      %v1291 = vld [vmem:[%s1288 + $0x8] sm:$0xf]
      %v1292 = vld [vmem:[%s1288 + $0xc] sm:$0xf]
      %v1293 = vld [vmem:[%s1288 + $0x10] sm:$0xf]
      %v1294 = vld [vmem:[%s1288 + $0x14] sm:$0xf]
      %v1295 = vld [vmem:[%s1288 + $0x18] sm:$0xf]
      %v1296 = vld [vmem:[%s1288 + $0x1c] sm:$0xf]
      %v1297 = vld [vmem:[%s1288 + $0x20] sm:$0xf]
      %v1298 = vld [vmem:[%s1288 + $0x24] sm:$0xf]
      %v1299 = vld [vmem:[%s1288 + $0x28] sm:$0xf]
      %v1300 = vld [vmem:[%s1288 + $0x2c] sm:$0xf]
      %v1301 = vld [vmem:[%s1288 + $0x30] sm:$0xf]
      %v1302 = vld [vmem:[%s1288 + $0x34] sm:$0xf]
      %v1303 = vld [vmem:[%s1288 + $0x38] sm:$0xf]
      %v1304 = vld [vmem:[%s1288 + $0x3c] sm:$0xf]
      %v1305 = vunpack.c.l.b16 %v1189
      %v1306 = vunpack.c.l.b16 %v1203
      %v1307 = vunpack.c.l.b16 %v1217
      %v1308 = vunpack.c.l.b16 %v1231
      %v1309 = vunpack.c.l.b16 %v1245
      %v1310 = vunpack.c.l.b16 %v1259
      %v1311 = vunpack.c.l.b16 %v1273
      %v1312 = vunpack.c.l.b16 %v1287
      %v1313 = vpack.c.b16 %v1306, %v1305
      %v1314 = vpack.c.b16 %v1308, %v1307
      %v1315 = vpack.c.b16 %v1310, %v1309
      %v1316 = vpack.c.b16 %v1312, %v1311
      %v1337 = vunpack.c.l.b16 %v1289
      %v1338 = vunpack.c.l.b16 %v1290
      %v1339 = vunpack.c.l.b16 %v1291
      %v1340 = vunpack.c.l.b16 %v1292
      %v1341 = vunpack.c.l.b16 %v1293
      %v1342 = vunpack.c.l.b16 %v1294
      %v1343 = vunpack.c.l.b16 %v1295
      %v1344 = vunpack.c.l.b16 %v1296
      %v1345 = vunpack.c.l.b16 %v1297
      %v1346 = vunpack.c.l.b16 %v1298
      %v1347 = vunpack.c.l.b16 %v1299
      %v1348 = vunpack.c.l.b16 %v1300
      %v1349 = vunpack.c.l.b16 %v1301
      %v1350 = vunpack.c.l.b16 %v1302
      %v1351 = vunpack.c.l.b16 %v1303
      %v1352 = vunpack.c.l.b16 %v1304
      %v1353 = vpack.c.b16 %v1338, %v1337
      %v1354 = vpack.c.b16 %v1340, %v1339
      %v1355 = vpack.c.b16 %v1342, %v1341
      %v1356 = vpack.c.b16 %v1344, %v1343
      %v1357 = vpack.c.b16 %v1346, %v1345
      %v1358 = vpack.c.b16 %v1348, %v1347
      %v1359 = vpack.c.b16 %v1350, %v1349
      %v1360 = vpack.c.b16 %v1352, %v1351
      %1369 = vmatprep.subr.bf16.mxu0 0
      %1370 = vmatpush1.bf16.msra.mxu0 %v1360
      %1371 = vmatprep.subr.bf16.mxu0 0
      %1372 = vmatpush1.bf16.msra.mxu0 %v1359
      %1373 = vmatprep.subr.bf16.mxu0 0
      %1374 = vmatpush1.bf16.msra.mxu0 %v1358
      %1375 = vmatprep.subr.bf16.mxu0 0
      %1376 = vmatpush1.bf16.msra.mxu0 %v1357
      %1377 = vmatprep.subr.bf16.mxu0 0
      %1378 = vmatpush1.bf16.msra.mxu0 %v1356
      %1379 = vmatprep.subr.bf16.mxu0 0
      %1380 = vmatpush1.bf16.msra.mxu0 %v1355
      %1381 = vmatprep.subr.bf16.mxu0 0
      %1382 = vmatpush1.bf16.msra.mxu0 %v1354
      %1383 = vmatprep.subr.bf16.mxu0 0
      %1384 = vmatpush1.bf16.msra.mxu0 %v1353
      %1385 = vmatprep.subr.bf16.mxu0 0
      %1386 = vmatpush2.bf16.msra.mxu0 0
      %1387 = vmatprep.subr.bf16.mxu0 0
      %1388 = vmatpush2.bf16.msra.mxu0 0
      %1389 = vmatprep.subr.bf16.mxu0 0
      %1390 = vmatpush2.bf16.msra.mxu0 0
      %1391 = vmatprep.subr.bf16.mxu0 0
      %1392 = vmatpush2.bf16.msra.mxu0 0
      %1393 = vmatprep.subr.bf16.mxu0 0
      %1394 = vmatpush2.bf16.msra.mxu0 0
      %1395 = vmatprep.subr.bf16.mxu0 0
      %1396 = vmatpush2.bf16.msra.mxu0 0
      %1397 = vmatprep.subr.bf16.mxu0 0
      %1398 = vmatpush2.bf16.msra.mxu0 0
      %1399 = vmatprep.subr.bf16.mxu0 0
      %1400 = vmatpush2.bf16.msra.mxu0 0
      %1401 = vmatprep.mubr.bf16.mxu0 0
      %1402 = vmatmul.mubr.bf16.gmra.mxu0 %v1313
      %v1403 = vpop.f32.mrf.mxu0
      %v1404 = vadd.f32 0.0, %v1403
      %v1405 = vpop.f32.mrf.mxu0
      %v1406 = vpop.f32.mrf.mxu0
      %v1407 = vadd.f32 0.0, %v1406
      %v1408 = vpop.f32.mrf.mxu0
      %1409 = vmatprep.mubr.bf16.mxu0 0
      %1410 = vmatmul.mubr.bf16.gmra.mxu0 %v1314
      %v1411 = vpop.f32.mrf.mxu0
      %v1412 = vadd.f32 0.0, %v1411
      %v1413 = vpop.f32.mrf.mxu0
      %v1414 = vpop.f32.mrf.mxu0
      %v1415 = vadd.f32 0.0, %v1414
      %v1416 = vpop.f32.mrf.mxu0
      %1417 = vmatprep.mubr.bf16.mxu0 0
      %1418 = vmatmul.mubr.bf16.gmra.mxu0 %v1315
      %v1419 = vpop.f32.mrf.mxu0
      %v1420 = vadd.f32 0.0, %v1419
      %v1421 = vpop.f32.mrf.mxu0
      %v1422 = vpop.f32.mrf.mxu0
      %v1423 = vadd.f32 0.0, %v1422
      %v1424 = vpop.f32.mrf.mxu0
      %1425 = vmatprep.mubr.bf16.mxu0 0
      %1426 = vmatmul.mubr.bf16.gmra.mxu0 %v1316
      %v1427 = vpop.f32.mrf.mxu0
      %v1428 = vadd.f32 0.0, %v1427
      %v1429 = vpop.f32.mrf.mxu0
      %v1430 = vpop.f32.mrf.mxu0
      %v1431 = vadd.f32 0.0, %v1430
      %v1432 = vpop.f32.mrf.mxu0
      %1433 = vdwg.mxu0
      %v1434 = vadd.f32 %v1152, %v1404
      %v1435 = vadd.f32 %v1153, %v1407
      %v1436 = vadd.f32 %v1154, %v1412
      %v1437 = vadd.f32 %v1155, %v1415
      %v1438 = vadd.f32 %v1156, %v1420
      %v1439 = vadd.f32 %v1157, %v1423
      %v1440 = vadd.f32 %v1158, %v1428
      %v1441 = vadd.f32 %v1159, %v1431
      %s1442 = scalar_lea.vmem %s197, 32
      %v1443 = vld [vmem:[%s1442] sm:$0xf]
      %v1444 = vld [vmem:[%s1442 + $0x20] sm:$0xf]
      %v1445 = vld [vmem:[%s1442 + $0x40] sm:$0xf]
      %v1446 = vld [vmem:[%s1442 + $0x60] sm:$0xf]
      %v1447 = vld [vmem:[%s1442 + $0x80] sm:$0xf]
      %v1448 = vld [vmem:[%s1442 + $0xa0] sm:$0xf]
      %v1449 = vld [vmem:[%s1442 + $0xc0] sm:$0xf]
      %v1450 = vld [vmem:[%s1442 + $0xe0] sm:$0xf]
      %s1451 = scalar_lea.vmem %s1, 384
      %v1452 = vld [vmem:[%s1451] sm:$0xf]
      %v1453 = vld [vmem:[%s1451 + $0x4] sm:$0xf]
      %v1454 = vld [vmem:[%s1451 + $0x8] sm:$0xf]
      %v1455 = vld [vmem:[%s1451 + $0xc] sm:$0xf]
      %v1456 = vld [vmem:[%s1451 + $0x10] sm:$0xf]
      %v1457 = vld [vmem:[%s1451 + $0x14] sm:$0xf]
      %v1458 = vld [vmem:[%s1451 + $0x18] sm:$0xf]
      %v1459 = vld [vmem:[%s1451 + $0x1c] sm:$0xf]
      %v1460 = vld [vmem:[%s1451 + $0x20] sm:$0xf]
      %v1461 = vld [vmem:[%s1451 + $0x24] sm:$0xf]
      %v1462 = vld [vmem:[%s1451 + $0x28] sm:$0xf]
      %v1463 = vld [vmem:[%s1451 + $0x2c] sm:$0xf]
      %v1464 = vld [vmem:[%s1451 + $0x30] sm:$0xf]
      %v1465 = vld [vmem:[%s1451 + $0x34] sm:$0xf]
      %v1466 = vld [vmem:[%s1451 + $0x38] sm:$0xf]
      %v1467 = vld [vmem:[%s1451 + $0x3c] sm:$0xf]
      %v1476 = vunpack.c.l.b16 %v1443
      %v1477 = vunpack.c.l.b16 %v1444
      %v1478 = vunpack.c.l.b16 %v1445
      %v1479 = vunpack.c.l.b16 %v1446
      %v1480 = vunpack.c.l.b16 %v1447
      %v1481 = vunpack.c.l.b16 %v1448
      %v1482 = vunpack.c.l.b16 %v1449
      %v1483 = vunpack.c.l.b16 %v1450
      %v1484 = vpack.c.b16 %v1477, %v1476
      %v1485 = vpack.c.b16 %v1479, %v1478
      %v1486 = vpack.c.b16 %v1481, %v1480
      %v1487 = vpack.c.b16 %v1483, %v1482
      %v1508 = vunpack.c.l.b16 %v1452
      %v1509 = vunpack.c.l.b16 %v1453
      %v1510 = vunpack.c.l.b16 %v1454
      %v1511 = vunpack.c.l.b16 %v1455
      %v1512 = vunpack.c.l.b16 %v1456
      %v1513 = vunpack.c.l.b16 %v1457
      %v1514 = vunpack.c.l.b16 %v1458
      %v1515 = vunpack.c.l.b16 %v1459
      %v1516 = vunpack.c.l.b16 %v1460
      %v1517 = vunpack.c.l.b16 %v1461
      %v1518 = vunpack.c.l.b16 %v1462
      %v1519 = vunpack.c.l.b16 %v1463
      %v1520 = vunpack.c.l.b16 %v1464
      %v1521 = vunpack.c.l.b16 %v1465
      %v1522 = vunpack.c.l.b16 %v1466
      %v1523 = vunpack.c.l.b16 %v1467
      %v1524 = vpack.c.b16 %v1509, %v1508
      %v1525 = vpack.c.b16 %v1511, %v1510
      %v1526 = vpack.c.b16 %v1513, %v1512
      %v1527 = vpack.c.b16 %v1515, %v1514
      %v1528 = vpack.c.b16 %v1517, %v1516
      %v1529 = vpack.c.b16 %v1519, %v1518
      %v1530 = vpack.c.b16 %v1521, %v1520
      %v1531 = vpack.c.b16 %v1523, %v1522
      %1540 = vmatprep.subr.bf16.mxu0 0
      %1541 = vmatpush1.bf16.msra.mxu0 %v1531
      %1542 = vmatprep.subr.bf16.mxu0 0
      %1543 = vmatpush1.bf16.msra.mxu0 %v1530
      %1544 = vmatprep.subr.bf16.mxu0 0
      %1545 = vmatpush1.bf16.msra.mxu0 %v1529
      %1546 = vmatprep.subr.bf16.mxu0 0
      %1547 = vmatpush1.bf16.msra.mxu0 %v1528
      %1548 = vmatprep.subr.bf16.mxu0 0
      %1549 = vmatpush1.bf16.msra.mxu0 %v1527
      %1550 = vmatprep.subr.bf16.mxu0 0
      %1551 = vmatpush1.bf16.msra.mxu0 %v1526
      %1552 = vmatprep.subr.bf16.mxu0 0
      %1553 = vmatpush1.bf16.msra.mxu0 %v1525
      %1554 = vmatprep.subr.bf16.mxu0 0
      %1555 = vmatpush1.bf16.msra.mxu0 %v1524
      %1556 = vmatprep.subr.bf16.mxu0 0
      %1557 = vmatpush2.bf16.msra.mxu0 0
      %1558 = vmatprep.subr.bf16.mxu0 0
      %1559 = vmatpush2.bf16.msra.mxu0 0
      %1560 = vmatprep.subr.bf16.mxu0 0
      %1561 = vmatpush2.bf16.msra.mxu0 0
      %1562 = vmatprep.subr.bf16.mxu0 0
      %1563 = vmatpush2.bf16.msra.mxu0 0
      %1564 = vmatprep.subr.bf16.mxu0 0
      %1565 = vmatpush2.bf16.msra.mxu0 0
      %1566 = vmatprep.subr.bf16.mxu0 0
      %1567 = vmatpush2.bf16.msra.mxu0 0
      %1568 = vmatprep.subr.bf16.mxu0 0
      %1569 = vmatpush2.bf16.msra.mxu0 0
      %1570 = vmatprep.subr.bf16.mxu0 0
      %1571 = vmatpush2.bf16.msra.mxu0 0
      %1572 = vmatprep.mubr.bf16.mxu0 0
      %1573 = vmatmul.mubr.bf16.gmra.mxu0 %v1484
      %v1574 = vpop.f32.mrf.mxu0
      %v1575 = vadd.f32 0.0, %v1574
      %v1576 = vpop.f32.mrf.mxu0
      %v1577 = vpop.f32.mrf.mxu0
      %v1578 = vadd.f32 0.0, %v1577
      %v1579 = vpop.f32.mrf.mxu0
      %1580 = vmatprep.mubr.bf16.mxu0 0
      %1581 = vmatmul.mubr.bf16.gmra.mxu0 %v1485
      %v1582 = vpop.f32.mrf.mxu0
      %v1583 = vadd.f32 0.0, %v1582
      %v1584 = vpop.f32.mrf.mxu0
      %v1585 = vpop.f32.mrf.mxu0
      %v1586 = vadd.f32 0.0, %v1585
      %v1587 = vpop.f32.mrf.mxu0
      %1588 = vmatprep.mubr.bf16.mxu0 0
      %1589 = vmatmul.mubr.bf16.gmra.mxu0 %v1486
      %v1590 = vpop.f32.mrf.mxu0
      %v1591 = vadd.f32 0.0, %v1590
      %v1592 = vpop.f32.mrf.mxu0
      %v1593 = vpop.f32.mrf.mxu0
      %v1594 = vadd.f32 0.0, %v1593
      %v1595 = vpop.f32.mrf.mxu0
      %1596 = vmatprep.mubr.bf16.mxu0 0
      %1597 = vmatmul.mubr.bf16.gmra.mxu0 %v1487
      %v1598 = vpop.f32.mrf.mxu0
      %v1599 = vadd.f32 0.0, %v1598
      %v1600 = vpop.f32.mrf.mxu0
      %v1601 = vpop.f32.mrf.mxu0
      %v1602 = vadd.f32 0.0, %v1601
      %v1603 = vpop.f32.mrf.mxu0
      %1604 = vdwg.mxu0
      %v1605 = vadd.f32 %v1434, %v1575
      %v1606 = vadd.f32 %v1435, %v1578
      %v1607 = vadd.f32 %v1436, %v1583
      %v1608 = vadd.f32 %v1437, %v1586
      %v1609 = vadd.f32 %v1438, %v1591
      %v1610 = vadd.f32 %v1439, %v1594
      %v1611 = vadd.f32 %v1440, %v1599
      %v1612 = vadd.f32 %v1441, %v1602
      %s1613 = scalar_lea.vmem %s197, 40
      %v1614 = vld [vmem:[%s1613] sm:$0xf]
      %v1615 = vld [vmem:[%s1613 + $0x20] sm:$0xf]
      %v1616 = vld [vmem:[%s1613 + $0x40] sm:$0xf]
      %v1617 = vld [vmem:[%s1613 + $0x60] sm:$0xf]
      %v1618 = vld [vmem:[%s1613 + $0x80] sm:$0xf]
      %v1619 = vld [vmem:[%s1613 + $0xa0] sm:$0xf]
      %v1620 = vld [vmem:[%s1613 + $0xc0] sm:$0xf]
      %v1621 = vld [vmem:[%s1613 + $0xe0] sm:$0xf]
      %s1622 = scalar_lea.vmem %s1, 448
      %v1623 = vld [vmem:[%s1622] sm:$0xf]
      %v1624 = vld [vmem:[%s1622 + $0x4] sm:$0xf]
      %v1625 = vld [vmem:[%s1622 + $0x8] sm:$0xf]
      %v1626 = vld [vmem:[%s1622 + $0xc] sm:$0xf]
      %v1627 = vld [vmem:[%s1622 + $0x10] sm:$0xf]
      %v1628 = vld [vmem:[%s1622 + $0x14] sm:$0xf]
      %v1629 = vld [vmem:[%s1622 + $0x18] sm:$0xf]
      %v1630 = vld [vmem:[%s1622 + $0x1c] sm:$0xf]
      %v1631 = vld [vmem:[%s1622 + $0x20] sm:$0xf]
      %v1632 = vld [vmem:[%s1622 + $0x24] sm:$0xf]
      %v1633 = vld [vmem:[%s1622 + $0x28] sm:$0xf]
      %v1634 = vld [vmem:[%s1622 + $0x2c] sm:$0xf]
      %v1635 = vld [vmem:[%s1622 + $0x30] sm:$0xf]
      %v1636 = vld [vmem:[%s1622 + $0x34] sm:$0xf]
      %v1637 = vld [vmem:[%s1622 + $0x38] sm:$0xf]
      %v1638 = vld [vmem:[%s1622 + $0x3c] sm:$0xf]
      %v1647 = vunpack.c.l.b16 %v1614
      %v1648 = vunpack.c.l.b16 %v1615
      %v1649 = vunpack.c.l.b16 %v1616
      %v1650 = vunpack.c.l.b16 %v1617
      %v1651 = vunpack.c.l.b16 %v1618
      %v1652 = vunpack.c.l.b16 %v1619
      %v1653 = vunpack.c.l.b16 %v1620
      %v1654 = vunpack.c.l.b16 %v1621
      %v1655 = vpack.c.b16 %v1648, %v1647
      %v1656 = vpack.c.b16 %v1650, %v1649
      %v1657 = vpack.c.b16 %v1652, %v1651
      %v1658 = vpack.c.b16 %v1654, %v1653
      %v1679 = vunpack.c.l.b16 %v1623
      %v1680 = vunpack.c.l.b16 %v1624
      %v1681 = vunpack.c.l.b16 %v1625
      %v1682 = vunpack.c.l.b16 %v1626
      %v1683 = vunpack.c.l.b16 %v1627
      %v1684 = vunpack.c.l.b16 %v1628
      %v1685 = vunpack.c.l.b16 %v1629
      %v1686 = vunpack.c.l.b16 %v1630
      %v1687 = vunpack.c.l.b16 %v1631
      %v1688 = vunpack.c.l.b16 %v1632
      %v1689 = vunpack.c.l.b16 %v1633
      %v1690 = vunpack.c.l.b16 %v1634
      %v1691 = vunpack.c.l.b16 %v1635
      %v1692 = vunpack.c.l.b16 %v1636
      %v1693 = vunpack.c.l.b16 %v1637
      %v1694 = vunpack.c.l.b16 %v1638
      %v1695 = vpack.c.b16 %v1680, %v1679
      %v1696 = vpack.c.b16 %v1682, %v1681
      %v1697 = vpack.c.b16 %v1684, %v1683
      %v1698 = vpack.c.b16 %v1686, %v1685
      %v1699 = vpack.c.b16 %v1688, %v1687
      %v1700 = vpack.c.b16 %v1690, %v1689
      %v1701 = vpack.c.b16 %v1692, %v1691
      %v1702 = vpack.c.b16 %v1694, %v1693
      %1711 = vmatprep.subr.bf16.mxu0 0
      %1712 = vmatpush1.bf16.msra.mxu0 %v1702
      %1713 = vmatprep.subr.bf16.mxu0 0
      %1714 = vmatpush1.bf16.msra.mxu0 %v1701
      %1715 = vmatprep.subr.bf16.mxu0 0
      %1716 = vmatpush1.bf16.msra.mxu0 %v1700
      %1717 = vmatprep.subr.bf16.mxu0 0
      %1718 = vmatpush1.bf16.msra.mxu0 %v1699
      %1719 = vmatprep.subr.bf16.mxu0 0
      %1720 = vmatpush1.bf16.msra.mxu0 %v1698
      %1721 = vmatprep.subr.bf16.mxu0 0
      %1722 = vmatpush1.bf16.msra.mxu0 %v1697
      %1723 = vmatprep.subr.bf16.mxu0 0
      %1724 = vmatpush1.bf16.msra.mxu0 %v1696
      %1725 = vmatprep.subr.bf16.mxu0 0
      %1726 = vmatpush1.bf16.msra.mxu0 %v1695
      %1727 = vmatprep.subr.bf16.mxu0 0
      %1728 = vmatpush2.bf16.msra.mxu0 0
      %1729 = vmatprep.subr.bf16.mxu0 0
      %1730 = vmatpush2.bf16.msra.mxu0 0
      %1731 = vmatprep.subr.bf16.mxu0 0
      %1732 = vmatpush2.bf16.msra.mxu0 0
      %1733 = vmatprep.subr.bf16.mxu0 0
      %1734 = vmatpush2.bf16.msra.mxu0 0
      %1735 = vmatprep.subr.bf16.mxu0 0
      %1736 = vmatpush2.bf16.msra.mxu0 0
      %1737 = vmatprep.subr.bf16.mxu0 0
      %1738 = vmatpush2.bf16.msra.mxu0 0
      %1739 = vmatprep.subr.bf16.mxu0 0
      %1740 = vmatpush2.bf16.msra.mxu0 0
      %1741 = vmatprep.subr.bf16.mxu0 0
      %1742 = vmatpush2.bf16.msra.mxu0 0
      %1743 = vmatprep.mubr.bf16.mxu0 0
      %1744 = vmatmul.mubr.bf16.gmra.mxu0 %v1655
      %v1745 = vpop.f32.mrf.mxu0
      %v1746 = vadd.f32 0.0, %v1745
      %v1747 = vpop.f32.mrf.mxu0
      %v1748 = vpop.f32.mrf.mxu0
      %v1749 = vadd.f32 0.0, %v1748
      %v1750 = vpop.f32.mrf.mxu0
      %1751 = vmatprep.mubr.bf16.mxu0 0
      %1752 = vmatmul.mubr.bf16.gmra.mxu0 %v1656
      %v1753 = vpop.f32.mrf.mxu0
      %v1754 = vadd.f32 0.0, %v1753
      %v1755 = vpop.f32.mrf.mxu0
      %v1756 = vpop.f32.mrf.mxu0
      %v1757 = vadd.f32 0.0, %v1756
      %v1758 = vpop.f32.mrf.mxu0
      %1759 = vmatprep.mubr.bf16.mxu0 0
      %1760 = vmatmul.mubr.bf16.gmra.mxu0 %v1657
      %v1761 = vpop.f32.mrf.mxu0
      %v1762 = vadd.f32 0.0, %v1761
      %v1763 = vpop.f32.mrf.mxu0
      %v1764 = vpop.f32.mrf.mxu0
      %v1765 = vadd.f32 0.0, %v1764
      %v1766 = vpop.f32.mrf.mxu0
      %1767 = vmatprep.mubr.bf16.mxu0 0
      %1768 = vmatmul.mubr.bf16.gmra.mxu0 %v1658
      %v1769 = vpop.f32.mrf.mxu0
      %v1770 = vadd.f32 0.0, %v1769
      %v1771 = vpop.f32.mrf.mxu0
      %v1772 = vpop.f32.mrf.mxu0
      %v1773 = vadd.f32 0.0, %v1772
      %v1774 = vpop.f32.mrf.mxu0
      %1775 = vdwg.mxu0
      %v1776 = vadd.f32 %v1605, %v1746
      %v1777 = vadd.f32 %v1606, %v1749
      %v1778 = vadd.f32 %v1607, %v1754
      %v1779 = vadd.f32 %v1608, %v1757
      %v1780 = vadd.f32 %v1609, %v1762
      %v1781 = vadd.f32 %v1610, %v1765
      %v1782 = vadd.f32 %v1611, %v1770
      %v1783 = vadd.f32 %v1612, %v1773
      %v1784 = vld [vmem:[%s1442] sm:$0xf]
      %v1785 = vld [vmem:[%s1442 + $0x4] sm:$0x1]
      %v1786 = vld [vmem:[%s1442 + $0x20] sm:$0xf]
      %v1787 = vld [vmem:[%s1442 + $0x24] sm:$0x1]
      %v1788 = vld [vmem:[%s1442 + $0x40] sm:$0xf]
      %v1789 = vld [vmem:[%s1442 + $0x44] sm:$0x1]
      %v1790 = vld [vmem:[%s1442 + $0x60] sm:$0xf]
      %v1791 = vld [vmem:[%s1442 + $0x64] sm:$0x1]
      %v1792 = vld [vmem:[%s1442 + $0x80] sm:$0xf]
      %v1793 = vld [vmem:[%s1442 + $0x84] sm:$0x1]
      %v1794 = vld [vmem:[%s1442 + $0xa0] sm:$0xf]
      %v1795 = vld [vmem:[%s1442 + $0xa4] sm:$0x1]
      %v1796 = vld [vmem:[%s1442 + $0xc0] sm:$0xf]
      %v1797 = vld [vmem:[%s1442 + $0xc4] sm:$0x1]
      %v1798 = vld [vmem:[%s1442 + $0xe0] sm:$0xf]
      %v1799 = vld [vmem:[%s1442 + $0xe4] sm:$0x1]
      %v1801 = vshrl.u32 %v1784, 16
      %v1803 = vrot.slane %v1801, 4
      %v1804 = vshll.u32 %v1784, 16
      %v1806 = vrot.slane %v1804, 5
      %v1807 = vor.u32 %v1803, %v1806
      %v1808 = vrot.slane %v1807, 4
      %v1810 = vshll.u32 %v1785, 16
      %v1812 = vrot.slane %v1810, 5
      %v1813 = vsel %vm551, %v1808, %v1812
      %v1815 = vshrl.u32 %v1786, 16
      %v1817 = vrot.slane %v1815, 4
      %v1818 = vshll.u32 %v1786, 16
      %v1820 = vrot.slane %v1818, 5
      %v1821 = vor.u32 %v1817, %v1820
      %v1822 = vrot.slane %v1821, 4
      %v1824 = vshll.u32 %v1787, 16
      %v1826 = vrot.slane %v1824, 5
      %v1827 = vsel %vm551, %v1822, %v1826
      %v1829 = vshrl.u32 %v1788, 16
      %v1831 = vrot.slane %v1829, 4
      %v1832 = vshll.u32 %v1788, 16
      %v1834 = vrot.slane %v1832, 5
      %v1835 = vor.u32 %v1831, %v1834
      %v1836 = vrot.slane %v1835, 4
      %v1838 = vshll.u32 %v1789, 16
      %v1840 = vrot.slane %v1838, 5
      %v1841 = vsel %vm551, %v1836, %v1840
      %v1843 = vshrl.u32 %v1790, 16
      %v1845 = vrot.slane %v1843, 4
      %v1846 = vshll.u32 %v1790, 16
      %v1848 = vrot.slane %v1846, 5
      %v1849 = vor.u32 %v1845, %v1848
      %v1850 = vrot.slane %v1849, 4
      %v1852 = vshll.u32 %v1791, 16
      %v1854 = vrot.slane %v1852, 5
      %v1855 = vsel %vm551, %v1850, %v1854
      %v1857 = vshrl.u32 %v1792, 16
      %v1859 = vrot.slane %v1857, 4
      %v1860 = vshll.u32 %v1792, 16
      %v1862 = vrot.slane %v1860, 5
      %v1863 = vor.u32 %v1859, %v1862
      %v1864 = vrot.slane %v1863, 4
      %v1866 = vshll.u32 %v1793, 16
      %v1868 = vrot.slane %v1866, 5
      %v1869 = vsel %vm551, %v1864, %v1868
      %v1871 = vshrl.u32 %v1794, 16
      %v1873 = vrot.slane %v1871, 4
      %v1874 = vshll.u32 %v1794, 16
      %v1876 = vrot.slane %v1874, 5
      %v1877 = vor.u32 %v1873, %v1876
      %v1878 = vrot.slane %v1877, 4
      %v1880 = vshll.u32 %v1795, 16
      %v1882 = vrot.slane %v1880, 5
      %v1883 = vsel %vm551, %v1878, %v1882
      %v1885 = vshrl.u32 %v1796, 16
      %v1887 = vrot.slane %v1885, 4
      %v1888 = vshll.u32 %v1796, 16
      %v1890 = vrot.slane %v1888, 5
      %v1891 = vor.u32 %v1887, %v1890
      %v1892 = vrot.slane %v1891, 4
      %v1894 = vshll.u32 %v1797, 16
      %v1896 = vrot.slane %v1894, 5
      %v1897 = vsel %vm551, %v1892, %v1896
      %v1899 = vshrl.u32 %v1798, 16
      %v1901 = vrot.slane %v1899, 4
      %v1902 = vshll.u32 %v1798, 16
      %v1904 = vrot.slane %v1902, 5
      %v1905 = vor.u32 %v1901, %v1904
      %v1906 = vrot.slane %v1905, 4
      %v1908 = vshll.u32 %v1799, 16
      %v1910 = vrot.slane %v1908, 5
      %v1911 = vsel %vm551, %v1906, %v1910
      %s1912 = scalar_lea.vmem %s1, 512
      %v1913 = vld [vmem:[%s1912] sm:$0xf]
      %v1914 = vld [vmem:[%s1912 + $0x4] sm:$0xf]
      %v1915 = vld [vmem:[%s1912 + $0x8] sm:$0xf]
      %v1916 = vld [vmem:[%s1912 + $0xc] sm:$0xf]
      %v1917 = vld [vmem:[%s1912 + $0x10] sm:$0xf]
      %v1918 = vld [vmem:[%s1912 + $0x14] sm:$0xf]
      %v1919 = vld [vmem:[%s1912 + $0x18] sm:$0xf]
      %v1920 = vld [vmem:[%s1912 + $0x1c] sm:$0xf]
      %v1921 = vld [vmem:[%s1912 + $0x20] sm:$0xf]
      %v1922 = vld [vmem:[%s1912 + $0x24] sm:$0xf]
      %v1923 = vld [vmem:[%s1912 + $0x28] sm:$0xf]
      %v1924 = vld [vmem:[%s1912 + $0x2c] sm:$0xf]
      %v1925 = vld [vmem:[%s1912 + $0x30] sm:$0xf]
      %v1926 = vld [vmem:[%s1912 + $0x34] sm:$0xf]
      %v1927 = vld [vmem:[%s1912 + $0x38] sm:$0xf]
      %v1928 = vld [vmem:[%s1912 + $0x3c] sm:$0xf]
      %v1929 = vunpack.c.l.b16 %v1813
      %v1930 = vunpack.c.l.b16 %v1827
      %v1931 = vunpack.c.l.b16 %v1841
      %v1932 = vunpack.c.l.b16 %v1855
      %v1933 = vunpack.c.l.b16 %v1869
      %v1934 = vunpack.c.l.b16 %v1883
      %v1935 = vunpack.c.l.b16 %v1897
      %v1936 = vunpack.c.l.b16 %v1911
      %v1937 = vpack.c.b16 %v1930, %v1929
      %v1938 = vpack.c.b16 %v1932, %v1931
      %v1939 = vpack.c.b16 %v1934, %v1933
      %v1940 = vpack.c.b16 %v1936, %v1935
      %v1961 = vunpack.c.l.b16 %v1913
      %v1962 = vunpack.c.l.b16 %v1914
      %v1963 = vunpack.c.l.b16 %v1915
      %v1964 = vunpack.c.l.b16 %v1916
      %v1965 = vunpack.c.l.b16 %v1917
      %v1966 = vunpack.c.l.b16 %v1918
      %v1967 = vunpack.c.l.b16 %v1919
      %v1968 = vunpack.c.l.b16 %v1920
      %v1969 = vunpack.c.l.b16 %v1921
      %v1970 = vunpack.c.l.b16 %v1922
      %v1971 = vunpack.c.l.b16 %v1923
      %v1972 = vunpack.c.l.b16 %v1924
      %v1973 = vunpack.c.l.b16 %v1925
      %v1974 = vunpack.c.l.b16 %v1926
      %v1975 = vunpack.c.l.b16 %v1927
      %v1976 = vunpack.c.l.b16 %v1928
      %v1977 = vpack.c.b16 %v1962, %v1961
      %v1978 = vpack.c.b16 %v1964, %v1963
      %v1979 = vpack.c.b16 %v1966, %v1965
      %v1980 = vpack.c.b16 %v1968, %v1967
      %v1981 = vpack.c.b16 %v1970, %v1969
      %v1982 = vpack.c.b16 %v1972, %v1971
      %v1983 = vpack.c.b16 %v1974, %v1973
      %v1984 = vpack.c.b16 %v1976, %v1975
      %1993 = vmatprep.subr.bf16.mxu0 0
      %1994 = vmatpush1.bf16.msra.mxu0 %v1984
      %1995 = vmatprep.subr.bf16.mxu0 0
      %1996 = vmatpush1.bf16.msra.mxu0 %v1983
      %1997 = vmatprep.subr.bf16.mxu0 0
      %1998 = vmatpush1.bf16.msra.mxu0 %v1982
      %1999 = vmatprep.subr.bf16.mxu0 0
      %2000 = vmatpush1.bf16.msra.mxu0 %v1981
      %2001 = vmatprep.subr.bf16.mxu0 0
      %2002 = vmatpush1.bf16.msra.mxu0 %v1980
      %2003 = vmatprep.subr.bf16.mxu0 0
      %2004 = vmatpush1.bf16.msra.mxu0 %v1979
      %2005 = vmatprep.subr.bf16.mxu0 0
      %2006 = vmatpush1.bf16.msra.mxu0 %v1978
      %2007 = vmatprep.subr.bf16.mxu0 0
      %2008 = vmatpush1.bf16.msra.mxu0 %v1977
      %2009 = vmatprep.subr.bf16.mxu0 0
      %2010 = vmatpush2.bf16.msra.mxu0 0
      %2011 = vmatprep.subr.bf16.mxu0 0
      %2012 = vmatpush2.bf16.msra.mxu0 0
      %2013 = vmatprep.subr.bf16.mxu0 0
      %2014 = vmatpush2.bf16.msra.mxu0 0
      %2015 = vmatprep.subr.bf16.mxu0 0
      %2016 = vmatpush2.bf16.msra.mxu0 0
      %2017 = vmatprep.subr.bf16.mxu0 0
      %2018 = vmatpush2.bf16.msra.mxu0 0
      %2019 = vmatprep.subr.bf16.mxu0 0
      %2020 = vmatpush2.bf16.msra.mxu0 0
      %2021 = vmatprep.subr.bf16.mxu0 0
      %2022 = vmatpush2.bf16.msra.mxu0 0
      %2023 = vmatprep.subr.bf16.mxu0 0
      %2024 = vmatpush2.bf16.msra.mxu0 0
      %2025 = vmatprep.mubr.bf16.mxu0 0
      %2026 = vmatmul.mubr.bf16.gmra.mxu0 %v1937
      %v2027 = vpop.f32.mrf.mxu0
      %v2028 = vadd.f32 0.0, %v2027
      %v2029 = vpop.f32.mrf.mxu0
      %v2030 = vpop.f32.mrf.mxu0
      %v2031 = vadd.f32 0.0, %v2030
      %v2032 = vpop.f32.mrf.mxu0
      %2033 = vmatprep.mubr.bf16.mxu0 0
      %2034 = vmatmul.mubr.bf16.gmra.mxu0 %v1938
      %v2035 = vpop.f32.mrf.mxu0
      %v2036 = vadd.f32 0.0, %v2035
      %v2037 = vpop.f32.mrf.mxu0
      %v2038 = vpop.f32.mrf.mxu0
      %v2039 = vadd.f32 0.0, %v2038
      %v2040 = vpop.f32.mrf.mxu0
      %2041 = vmatprep.mubr.bf16.mxu0 0
      %2042 = vmatmul.mubr.bf16.gmra.mxu0 %v1939
      %v2043 = vpop.f32.mrf.mxu0
      %v2044 = vadd.f32 0.0, %v2043
      %v2045 = vpop.f32.mrf.mxu0
      %v2046 = vpop.f32.mrf.mxu0
      %v2047 = vadd.f32 0.0, %v2046
      %v2048 = vpop.f32.mrf.mxu0
      %2049 = vmatprep.mubr.bf16.mxu0 0
      %2050 = vmatmul.mubr.bf16.gmra.mxu0 %v1940
      %v2051 = vpop.f32.mrf.mxu0
      %v2052 = vadd.f32 0.0, %v2051
      %v2053 = vpop.f32.mrf.mxu0
      %v2054 = vpop.f32.mrf.mxu0
      %v2055 = vadd.f32 0.0, %v2054
      %v2056 = vpop.f32.mrf.mxu0
      %2057 = vdwg.mxu0
      %v2058 = vadd.f32 %v1776, %v2028
      %v2059 = vadd.f32 %v1777, %v2031
      %v2060 = vadd.f32 %v1778, %v2036
      %v2061 = vadd.f32 %v1779, %v2039
      %v2062 = vadd.f32 %v1780, %v2044
      %v2063 = vadd.f32 %v1781, %v2047
      %v2064 = vadd.f32 %v1782, %v2052
      %v2065 = vadd.f32 %v1783, %v2055
      %v2066 = vld [vmem:[%s2] sm:$0x1]
      %v2068 = vlaneseq
      %v2069 = vshrl.u32 %v2068, 7
      %v2070 = vsub.s32 0, %v2069
      %v2071 = vrot.slane %v2066, %v2070
      %v2073 = vadd.f32 %v2058, %v2071
      %v2074 = vadd.f32 %v2059, %v2071
      %v2075 = vadd.f32 %v2060, %v2071
      %v2076 = vadd.f32 %v2061, %v2071
      %v2077 = vadd.f32 %v2062, %v2071
      %v2078 = vadd.f32 %v2063, %v2071
      %v2079 = vadd.f32 %v2064, %v2071
      %v2080 = vadd.f32 %v2065, %v2071
      %vm2081 = vcmp.ge.f32.partialorder %v2073, 0.0
      %vm2082 = vcmp.ge.f32.partialorder %v2074, 0.0
      %vm2083 = vcmp.ge.f32.partialorder %v2075, 0.0
      %vm2084 = vcmp.ge.f32.partialorder %v2076, 0.0
      %vm2085 = vcmp.ge.f32.partialorder %v2077, 0.0
      %vm2086 = vcmp.ge.f32.partialorder %v2078, 0.0
      %vm2087 = vcmp.ge.f32.partialorder %v2079, 0.0
      %vm2088 = vcmp.ge.f32.partialorder %v2080, 0.0
      %v2089 = vmul.f32 %v2073, 0.2
      %v2090 = vmul.f32 %v2074, 0.2
      %v2091 = vmul.f32 %v2075, 0.2
      %v2092 = vmul.f32 %v2076, 0.2
      %v2093 = vmul.f32 %v2077, 0.2
      %v2094 = vmul.f32 %v2078, 0.2
      %v2095 = vmul.f32 %v2079, 0.2
      %v2096 = vmul.f32 %v2080, 0.2
      %v2097 = vsel %vm2081, %v2073, %v2089
      %v2098 = vsel %vm2082, %v2074, %v2090
      %v2099 = vsel %vm2083, %v2075, %v2091
      %v2100 = vsel %vm2084, %v2076, %v2092
      %v2101 = vsel %vm2085, %v2077, %v2093
      %v2102 = vsel %vm2086, %v2078, %v2094
      %v2103 = vsel %vm2087, %v2079, %v2095
      %v2104 = vsel %vm2088, %v2080, %v2096
      %2105 = vst [vmem:[%s206] sm:$0xff] %v2097
      %2106 = vst [vmem:[%s206 + $0x8] sm:$0xff] %v2098
      %2107 = vst [vmem:[%s206 + $0x10] sm:$0xff] %v2099
      %2108 = vst [vmem:[%s206 + $0x18] sm:$0xff] %v2100
      %2109 = vst [vmem:[%s206 + $0x20] sm:$0xff] %v2101
      %2110 = vst [vmem:[%s206 + $0x28] sm:$0xff] %v2102
      %2111 = vst [vmem:[%s206 + $0x30] sm:$0xff] %v2103
      %2112 = vst [vmem:[%s206 + $0x38] sm:$0xff] %v2104
      %s2113 = smul.u32 8, %s19
      %p2114 = scmp.lt.s32.totalorder %s18, 1
      %s2115 = scalar_select %p2114, %s18, 1
      %p2116 = scmp.lt.s32.totalorder %s2113, 7
      %s2117 = scalar_select %p2116, %s2113, 7
      %s2118 = smul.addr %s2115, 8
      %s2119 = sadd.s32 %s2117, %s2118
      %s2120 = smul.addr %s2119, 8
      %s2121 = scalar_lea.vmem %s3, %s2120
      // Predicated region
      $region33: #{downsample_forward.1} parent=31 // pred_check
        %p2122 = pneg %p116
      $region34: #{downsample_forward.1} parent=31 // pred_check_branch
        %2124 = sbr.rel (%p2122) target = $region36
      $region35: #{downsample_forward.1} parent=31 // pred_region
        %s2125 = smul.u32 8, %s19
      $region36: #{downsample_forward.1} parent=31 // pred_fallthru
        _
    $region32: #{downsample_forward.1} parent=5 // pred_fallthru
      _
    %p2126 = scmp.le.s32.totalorder 2, %s9
    // Predicated region
    $region37: #{downsample_forward.1} parent=5 // pred_check
      %p2127 = pneg %p2126
    $region38: #{downsample_forward.1} parent=5 // pred_check_branch
      %2129 = sbr.rel (%p2127) target = $region40
    $region39: #{downsample_forward.1} parent=5 // pred_region
      %s2130 = ssub.s32 %s9, 2
      // Predicated region
      $region41: #{downsample_forward.1} parent=39 // pred_check
        %p2131 = pneg %p122
      $region42: #{downsample_forward.1} parent=39 // pred_check_branch
        %2133 = sbr.rel (%p2131) target = $region44
      $region43: #{downsample_forward.1} parent=39 // pred_region
        %s2134 = smul.u32 8, %s21
        %p2135 = scmp.lt.s32.totalorder %s20, 1
        %s2136 = scalar_select %p2135, %s20, 1
        %p2137 = scmp.lt.s32.totalorder %s2134, 7
        %s2138 = scalar_select %p2137, %s2134, 7
        %s2139 = smul.addr %s2136, 8
        %s2140 = sadd.s32 %s2138, %s2139
        %s2141 = smul.addr %s2140, 8
        %s2142 = scalar_lea.vmem %s3, %s2141
      $region44: #{downsample_forward.1} parent=39 // pred_fallthru
        _
    $region40: #{downsample_forward.1} parent=5 // pred_fallthru
      _
  $region6: #{downsample_forward.1} parent=0 // loop_footer
    %s13 = sadd.s32 1, %s9
  $region7: #{downsample_forward.1} parent=0 // loop_footer_branch
    %8 = sbr.rel target = $region3
  $region8: #{downsample_forward.1} parent=0 // loop_exit
    _

</llo_original>
